<compile_context>
chip_gen: v7x
topology: tpu7x:2x2x1
jax: 0.10.0
libtpu: 0.0.40
codegen_flags: <defaults>
</compile_context>

<pallas_src>
import jax
import jax.numpy as jnp
from jax.experimental import pallas as pl
from jax.experimental.pallas import tpu as pltpu

# --- model dimensions (consistent with the IQN_Policy constructor) ----------
SELF_DIM, STATIC_DIM, DYNAMIC_DIM = 8, 8, 16
SELF_FEAT, STATIC_FEAT, DYNAMIC_FEAT = 8, 8, 16
CONCAT_FEAT = SELF_FEAT + STATIC_FEAT + DYNAMIC_FEAT   # 32
HIDDEN = 32
ACTION = 8
N_COS = 64                                             # self.n in the module
NUM_TAU = 8
IN_DIM = SELF_DIM + STATIC_DIM + DYNAMIC_DIM           # 32
OUT_W = NUM_TAU * ACTION                               # 64 useful output lanes
OUT_PAD = 128                                          # full-lane-width store
PACK_W = NUM_TAU * HIDDEN                              # 256 (== NUM_TAU*CONCAT_FEAT)
COS_W = NUM_TAU * N_COS                                # 512

# weight-slab row offsets (all multiples of the bf16 sublane tile of 16)
R_ENC = 0
R_COS = R_ENC + IN_DIM          # 32
R_H1 = R_COS + COS_W            # 544
R_H2 = R_H1 + PACK_W            # 800
R_OUT = R_H2 + PACK_W           # 1056
SLAB_ROWS = R_OUT + PACK_W      # 1312


def iqn_kernel(x_ref, cosarg_ref, w_ref, b_ref, out_ref):
    f32, bf16 = jnp.float32, jnp.bfloat16
    relu = lambda v: jnp.maximum(v, 0.0)

    # static, tile-aligned views into the resident bf16 weight / f32 bias slabs
    w_enc = w_ref[R_ENC:R_COS, :]            # (32, 256)  encoder, lane-tiled x8
    w_cos = w_ref[R_COS:R_H1, :]             # (512, 256) cos embedding, block-diag x8
    w_h1 = w_ref[R_H1:R_H2, :]               # (256, 256) hidden 1, block-diag x8
    w_h2 = w_ref[R_H2:R_OUT, :]              # (256, 256) hidden 2, block-diag x8
    w_out = w_ref[R_OUT:SLAB_ROWS, 0:OUT_PAD]  # (256, 128) output, block-diag x8 (+zero pad)
    b_enc = b_ref[0:1, :]
    b_cos = b_ref[1:2, :]
    b_h1 = b_ref[2:3, :]
    b_h2 = b_ref[3:4, :]
    b_out = b_ref[4:5, 0:OUT_PAD]

    # fused block-diagonal encoder, lane-tiled over the 8 tau groups:
    # features come out already replicated across tau groups -> (TB, 256)
    x = x_ref[...].astype(bf16)                                       # (TB, 32)
    feats = relu(jnp.dot(x, w_enc, preferred_element_type=f32) + b_enc)

    # cos embedding: cos argument is pre-laid-out (TB, 512) f32, lane group t
    # holds tau_t * pi * i (i = 0..63); cos on the EUP, matmul on the MXU.
    cosv = jnp.cos(cosarg_ref[...])                                   # (TB, 512) f32
    cfeat = relu(jnp.dot(cosv.astype(bf16), w_cos, preferred_element_type=f32) + b_cos)

    # per-tau feature * cos-feature mix (pure VPU, lane-dense)
    mix = (feats * cfeat).astype(bf16)                                # (TB, 256)

    h1 = relu(jnp.dot(mix, w_h1, preferred_element_type=f32) + b_h1)  # (TB, 256)
    h2 = relu(jnp.dot(h1.astype(bf16), w_h2, preferred_element_type=f32) + b_h2)

    # block-diagonal output weights: lane l = tau*ACTION + action, lanes 64..127
    # are zero padding -> one unmasked full-width (TB, 128) store.
    out_ref[...] = jnp.dot(h2.astype(bf16), w_out, preferred_element_type=f32) + b_out


def _round_up(n, m):
    return ((n + m - 1) // m) * m


def pack_params(params):
    """Pack the 7 (w, b) pairs into one bf16 weight slab + one f32 bias slab.

    Call once at model-load time; the slabs are passed to iqn_forward.
    """
    (ws, bs), (wst, bst), (wd, bd), (wc, bc), (w1, b1), (w2, b2), (wo, bo) = params

    # fused block-diagonal encoder weight (self / static / dynamic) -> (32, 32)
    w_enc = jnp.zeros((IN_DIM, CONCAT_FEAT), jnp.float32)
    w_enc = w_enc.at[:SELF_DIM, :SELF_FEAT].set(ws)
    w_enc = w_enc.at[SELF_DIM:SELF_DIM + STATIC_DIM,
                     SELF_FEAT:SELF_FEAT + STATIC_FEAT].set(wst)
    w_enc = w_enc.at[SELF_DIM + STATIC_DIM:, SELF_FEAT + STATIC_FEAT:].set(wd)
    b_enc = jnp.concatenate([bs, bst, bd], axis=1)                   # (1, 32)

    def block_diag(w, n):
        din, dout = w.shape
        out = jnp.zeros((n * din, n * dout), jnp.float32)
        for t in range(n):
            out = out.at[t * din:(t + 1) * din, t * dout:(t + 1) * dout].set(w)
        return out

    w_enc_t = jnp.tile(w_enc, (1, NUM_TAU))                          # (32, 256)
    w_cos_bd = block_diag(wc.astype(jnp.float32), NUM_TAU)           # (512, 256)
    w1_bd = block_diag(w1.astype(jnp.float32), NUM_TAU)              # (256, 256)
    w2_bd = block_diag(w2.astype(jnp.float32), NUM_TAU)              # (256, 256)
    wo_bd = block_diag(wo.astype(jnp.float32), NUM_TAU)              # (256, 64)
    wo_bd = jnp.pad(wo_bd, ((0, 0), (0, PACK_W - OUT_W)))            # (256, 256)

    w_slab = jnp.concatenate(
        [w_enc_t, w_cos_bd, w1_bd, w2_bd, wo_bd], axis=0).astype(jnp.bfloat16)
    assert w_slab.shape == (SLAB_ROWS, PACK_W)

    b_slab = jnp.concatenate(
        [jnp.tile(b_enc, (1, NUM_TAU)),
         jnp.tile(bc, (1, NUM_TAU)),
         jnp.tile(b1, (1, NUM_TAU)),
         jnp.tile(b2, (1, NUM_TAU)),
         jnp.pad(jnp.tile(bo, (1, NUM_TAU)), ((0, 0), (0, PACK_W - OUT_W))),
         jnp.zeros((3, PACK_W), jnp.float32)], axis=0).astype(jnp.float32)   # (8, 256)
    return w_slab, b_slab


def iqn_forward(x, taus, w_slab, b_slab, block_b=512):
    """x: (B, IN_DIM) f32; taus: (B, NUM_TAU) f32 (already scaled by cvar)."""
    B = x.shape[0]
    b8 = _round_up(B, 8)
    # batch tile: multiple of 8, at most block_b, and capped at ceil(B/2) so
    # the "parallel" grid has >=2 steps (lets v7x split work over its 2 TCs).
    half = _round_up(-(-b8 // 2), 8)
    TB = max(8, min(_round_up(block_b, 8), half))
    B_pad = _round_up(B, TB)

    x_p, taus_p = x, taus
    if B_pad != B:
        x_p = jnp.pad(x, ((0, B_pad - B), (0, 0)))
        taus_p = jnp.pad(taus, ((0, B_pad - B), (0, 0)))

    # cos argument laid out batch-in-rows, (tau, cos-index) packed into lanes:
    # cos_arg[b, t*64 + i] = tau[b, t] * pi * i   (kept f32 for cos accuracy).
    pis = jnp.pi * jnp.arange(N_COS, dtype=jnp.float32)
    cos_arg = (taus_p[:, :, None] * pis[None, None, :]).reshape(B_pad, COS_W)

    out = pl.pallas_call(
        iqn_kernel,
        out_shape=jax.ShapeDtypeStruct((B_pad, OUT_PAD), jnp.float32),
        grid=(B_pad // TB,),
        in_specs=[
            pl.BlockSpec((TB, IN_DIM), lambda i: (i, 0)),
            pl.BlockSpec((TB, COS_W), lambda i: (i, 0)),
            pl.BlockSpec((SLAB_ROWS, PACK_W), lambda i: (0, 0)),   # resident slab
            pl.BlockSpec((8, PACK_W), lambda i: (0, 0)),           # resident biases
        ],
        out_specs=pl.BlockSpec((TB, OUT_PAD), lambda i: (i, 0)),
        compiler_params=pltpu.CompilerParams(
            dimension_semantics=("parallel",),
            vmem_limit_bytes=32 * 1024 * 1024),
    )(x_p, cos_arg, w_slab, b_slab)

    quantiles = out[:B, :OUT_W].reshape(B, NUM_TAU, ACTION)
    return quantiles, taus[:, :, None]


def init_params(key):
    # Deterministic synthetic init (matches PyTorch Linear's uniform scale).
    dims = [(SELF_DIM, SELF_FEAT), (STATIC_DIM, STATIC_FEAT),
            (DYNAMIC_DIM, DYNAMIC_FEAT), (N_COS, CONCAT_FEAT),
            (CONCAT_FEAT, HIDDEN), (HIDDEN, HIDDEN), (HIDDEN, ACTION)]
    params = []
    for din, dout in dims:
        key, k1, k2 = jax.random.split(key, 3)
        bound = 1.0 / float(din) ** 0.5
        w = jax.random.uniform(k1, (din, dout), jnp.float32, -bound, bound)
        b = jax.random.uniform(k2, (1, dout), jnp.float32, -bound, bound)
        params.append((w, b))
    return params


def reference(x, taus, params):
    # Pure-JAX f32 replica of IQN_Policy.forward (taus supplied externally, 2-D).
    (ws, bs), (wst, bst), (wd, bd), (wc, bc), (w1, b1), (w2, b2), (wo, bo) = params
    relu = lambda z: jnp.maximum(z, 0.0)
    B = x.shape[0]
    fs = relu(x[:, :SELF_DIM] @ ws + bs)
    fst = relu(x[:, SELF_DIM:SELF_DIM + STATIC_DIM] @ wst + bst)
    fd = relu(x[:, SELF_DIM + STATIC_DIM:] @ wd + bd)
    feats = jnp.concatenate([fs, fst, fd], axis=1)
    pis = jnp.pi * jnp.arange(N_COS, dtype=jnp.float32).reshape(1, 1, N_COS)
    cos = jnp.cos(taus[:, :, None] * pis).reshape(B * NUM_TAU, N_COS)
    cf = relu(cos @ wc + bc).reshape(B, NUM_TAU, CONCAT_FEAT)
    mix = (feats[:, None, :] * cf).reshape(B * NUM_TAU, CONCAT_FEAT)
    h1 = relu(mix @ w1 + b1)
    h2 = relu(h1 @ w2 + b2)
    q = h2 @ wo + bo
    return q.reshape(B, NUM_TAU, ACTION)


def reference_bf16(x, taus, params):
    # Replica with bf16 matmul inputs / f32 accumulation at the same points as
    # the kernel (tight-tolerance correctness check of the bf16 kernel math).
    (ws, bs), (wst, bst), (wd, bd), (wc, bc), (w1, b1), (w2, b2), (wo, bo) = params
    bf = jnp.bfloat16
    mm = lambda a, w: jnp.dot(a.astype(bf), w.astype(bf),
                              preferred_element_type=jnp.float32)
    relu = lambda z: jnp.maximum(z, 0.0)
    B = x.shape[0]
    fs = relu(mm(x[:, :SELF_DIM], ws) + bs)
    fst = relu(mm(x[:, SELF_DIM:SELF_DIM + STATIC_DIM], wst) + bst)
    fd = relu(mm(x[:, SELF_DIM + STATIC_DIM:], wd) + bd)
    feats = jnp.concatenate([fs, fst, fd], axis=1)
    pis = jnp.pi * jnp.arange(N_COS, dtype=jnp.float32).reshape(1, 1, N_COS)
    cos = jnp.cos(taus[:, :, None] * pis).reshape(B * NUM_TAU, N_COS)
    cf = relu(mm(cos, wc) + bc).reshape(B, NUM_TAU, CONCAT_FEAT)
    mix = (feats[:, None, :] * cf).reshape(B * NUM_TAU, CONCAT_FEAT)
    h1 = relu(mm(mix, w1) + b1)
    h2 = relu(mm(h1, w2) + b2)
    q = mm(h2, wo) + bo
    return q.reshape(B, NUM_TAU, ACTION)


if __name__ == "__main__":
    key = jax.random.PRNGKey(0)
    key, pkey = jax.random.split(key)
    params = init_params(pkey)
    w_slab, b_slab = pack_params(params)   # packed once, reused across calls

    cvar = 1.0
    # B=2 (single tile), B=40 with block_b=16 (multi-step grid + batch padding),
    # B=40 with default block_b (>=2-step split for the two-TC path).
    for B, block_b in ((2, 512), (40, 16), (40, 512)):
        key, xkey, tkey = jax.random.split(key, 3)
        x = jax.random.normal(xkey, (B, IN_DIM), jnp.float32)
        # TODO(synk): the module samples taus with torch.rand inside forward;
        # here they are sampled wrapper-side and passed in explicitly.
        taus = jax.random.uniform(tkey, (B, NUM_TAU), jnp.float32) * cvar

        quantiles, taus_out = iqn_forward(x, taus, w_slab, b_slab, block_b=block_b)
        quantiles = jax.block_until_ready(quantiles)

        assert quantiles.shape == (B, NUM_TAU, ACTION)
        assert taus_out.shape == (B, NUM_TAU, 1)

        ref_bf = reference_bf16(x, taus, params)
        err_bf = float(jnp.max(jnp.abs(quantiles - ref_bf)))
        assert jnp.allclose(quantiles, ref_bf, atol=5e-3, rtol=5e-3), err_bf

        ref = reference(x, taus, params)
        err = float(jnp.max(jnp.abs(quantiles - ref)))
        assert jnp.allclose(quantiles, ref, atol=3e-2, rtol=3e-2), err

    print("KERNEL_OK")
</pallas_src>

<mosaic_0001>
module attributes {stable_mosaic.version = 11 : i64} {
  func.func @iqn_kernel(%arg0: i32, %arg1: memref<8x32xf32, #tpu.memory_space<vmem>>, %arg2: memref<8x512xf32, #tpu.memory_space<vmem>>, %arg3: memref<1312x256xbf16, #tpu.memory_space<vmem>>, %arg4: memref<8x256xf32, #tpu.memory_space<vmem>>, %arg5: memref<8x128xf32, #tpu.memory_space<vmem>>) attributes {dimension_semantics = [#tpu.dimension_semantics<parallel>], iteration_bounds = array<i64: 1>, scalar_prefetch = 0 : i64, scratch_operands = 0 : i64, tpu.core_type = #tpu.core_type<tc>, window_params = [{transform_indices = @transform_0, window_bounds = array<i64: 8, 32>}, {transform_indices = @transform_1, window_bounds = array<i64: 8, 512>}, {pipeline_mode = #tpu.pipeline_mode<synchronous>, transform_indices = @transform_2, window_bounds = array<i64: 1312, 256>}, {pipeline_mode = #tpu.pipeline_mode<synchronous>, transform_indices = @transform_3, window_bounds = array<i64: 8, 256>}, {transform_indices = @transform_4, window_bounds = array<i64: 8, 128>}]} {
    %c0 = arith.constant 0 : index
    %c0_0 = arith.constant 0 : index
    %0 = vector.load %arg3[%c0, %c0_0] : memref<1312x256xbf16, #tpu.memory_space<vmem>>, vector<32x256xbf16>
    %c32 = arith.constant 32 : index
    %c0_1 = arith.constant 0 : index
    %1 = vector.load %arg3[%c32, %c0_1] : memref<1312x256xbf16, #tpu.memory_space<vmem>>, vector<512x256xbf16>
    %c544 = arith.constant 544 : index
    %c0_2 = arith.constant 0 : index
    %2 = vector.load %arg3[%c544, %c0_2] : memref<1312x256xbf16, #tpu.memory_space<vmem>>, vector<256x256xbf16>
    %c800 = arith.constant 800 : index
    %c0_3 = arith.constant 0 : index
    %3 = vector.load %arg3[%c800, %c0_3] : memref<1312x256xbf16, #tpu.memory_space<vmem>>, vector<256x256xbf16>
    %c1056 = arith.constant 1056 : index
    %c0_4 = arith.constant 0 : index
    %4 = vector.load %arg3[%c1056, %c0_4] : memref<1312x256xbf16, #tpu.memory_space<vmem>>, vector<256x128xbf16>
    %c0_5 = arith.constant 0 : index
    %c0_6 = arith.constant 0 : index
    %5 = vector.load %arg4[%c0_5, %c0_6] : memref<8x256xf32, #tpu.memory_space<vmem>>, vector<1x256xf32>
    %c1 = arith.constant 1 : index
    %c0_7 = arith.constant 0 : index
    %6 = vector.load %arg4[%c1, %c0_7] : memref<8x256xf32, #tpu.memory_space<vmem>>, vector<1x256xf32>
    %c2 = arith.constant 2 : index
    %c0_8 = arith.constant 0 : index
    %7 = vector.load %arg4[%c2, %c0_8] : memref<8x256xf32, #tpu.memory_space<vmem>>, vector<1x256xf32>
    %c3 = arith.constant 3 : index
    %c0_9 = arith.constant 0 : index
    %8 = vector.load %arg4[%c3, %c0_9] : memref<8x256xf32, #tpu.memory_space<vmem>>, vector<1x256xf32>
    %c4 = arith.constant 4 : index
    %c0_10 = arith.constant 0 : index
    %9 = vector.load %arg4[%c4, %c0_10] : memref<8x256xf32, #tpu.memory_space<vmem>>, vector<1x128xf32>
    %c0_11 = arith.constant 0 : index
    %c0_12 = arith.constant 0 : index
    %10 = vector.load %arg1[%c0_11, %c0_12] : memref<8x32xf32, #tpu.memory_space<vmem>>, vector<8x32xf32>
    %11 = arith.truncf %10 : vector<8x32xf32> to vector<8x32xbf16>
    %cst = arith.constant dense<0.000000e+00> : vector<8x256xf32>
    %12 = tpu.matmul %11, %0, %cst {dimension_numbers = #tpu.dot_dimension_numbers<[1], [0], [0], [1], [0, 0, 1, 1], [], []>} : vector<8x32xbf16>, vector<32x256xbf16>, vector<8x256xf32> -> vector<8x256xf32>
    %13 = vector.broadcast %5 : vector<1x256xf32> to vector<8x256xf32>
    %14 = arith.addf %12, %13 : vector<8x256xf32>
    %cst_13 = arith.constant 0.000000e+00 : f32
    %15 = vector.broadcast %cst_13 : f32 to vector<8x256xf32>
    %16 = arith.maximumf %14, %15 : vector<8x256xf32>
    %c0_14 = arith.constant 0 : index
    %c0_15 = arith.constant 0 : index
    %17 = vector.load %arg2[%c0_14, %c0_15] : memref<8x512xf32, #tpu.memory_space<vmem>>, vector<8x512xf32>
    %18 = math.cos %17 : vector<8x512xf32>
    %19 = arith.truncf %18 : vector<8x512xf32> to vector<8x512xbf16>
    %cst_16 = arith.constant dense<0.000000e+00> : vector<8x256xf32>
    %20 = tpu.matmul %19, %1, %cst_16 {dimension_numbers = #tpu.dot_dimension_numbers<[1], [0], [0], [1], [0, 0, 1, 1], [], []>} : vector<8x512xbf16>, vector<512x256xbf16>, vector<8x256xf32> -> vector<8x256xf32>
    %21 = vector.broadcast %6 : vector<1x256xf32> to vector<8x256xf32>
    %22 = arith.addf %20, %21 : vector<8x256xf32>
    %cst_17 = arith.constant 0.000000e+00 : f32
    %23 = vector.broadcast %cst_17 : f32 to vector<8x256xf32>
    %24 = arith.maximumf %22, %23 : vector<8x256xf32>
    %25 = arith.mulf %16, %24 : vector<8x256xf32>
    %26 = arith.truncf %25 : vector<8x256xf32> to vector<8x256xbf16>
    %cst_18 = arith.constant dense<0.000000e+00> : vector<8x256xf32>
    %27 = tpu.matmul %26, %2, %cst_18 {dimension_numbers = #tpu.dot_dimension_numbers<[1], [0], [0], [1], [0, 0, 1, 1], [], []>} : vector<8x256xbf16>, vector<256x256xbf16>, vector<8x256xf32> -> vector<8x256xf32>
    %28 = vector.broadcast %7 : vector<1x256xf32> to vector<8x256xf32>
    %29 = arith.addf %27, %28 : vector<8x256xf32>
    %cst_19 = arith.constant 0.000000e+00 : f32
    %30 = vector.broadcast %cst_19 : f32 to vector<8x256xf32>
    %31 = arith.maximumf %29, %30 : vector<8x256xf32>
    %32 = arith.truncf %31 : vector<8x256xf32> to vector<8x256xbf16>
    %cst_20 = arith.constant dense<0.000000e+00> : vector<8x256xf32>
    %33 = tpu.matmul %32, %3, %cst_20 {dimension_numbers = #tpu.dot_dimension_numbers<[1], [0], [0], [1], [0, 0, 1, 1], [], []>} : vector<8x256xbf16>, vector<256x256xbf16>, vector<8x256xf32> -> vector<8x256xf32>
    %34 = vector.broadcast %8 : vector<1x256xf32> to vector<8x256xf32>
    %35 = arith.addf %33, %34 : vector<8x256xf32>
    %cst_21 = arith.constant 0.000000e+00 : f32
    %36 = vector.broadcast %cst_21 : f32 to vector<8x256xf32>
    %37 = arith.maximumf %35, %36 : vector<8x256xf32>
    %38 = arith.truncf %37 : vector<8x256xf32> to vector<8x256xbf16>
    %cst_22 = arith.constant dense<0.000000e+00> : vector<8x128xf32>
    %39 = tpu.matmul %38, %4, %cst_22 {dimension_numbers = #tpu.dot_dimension_numbers<[1], [0], [0], [1], [0, 0, 1, 1], [], []>} : vector<8x256xbf16>, vector<256x128xbf16>, vector<8x128xf32> -> vector<8x128xf32>
    %40 = vector.broadcast %9 : vector<1x128xf32> to vector<8x128xf32>
    %41 = arith.addf %39, %40 : vector<8x128xf32>
    %c0_23 = arith.constant 0 : index
    %c0_24 = arith.constant 0 : index
    %42 = vector.load %arg5[%c0_23, %c0_24] : memref<8x128xf32, #tpu.memory_space<vmem>>, vector<8x128xf32>
    tpu.vector_store %arg5[%c0_23, %c0_24], %41 {strides = array<i32>} : memref<8x128xf32, #tpu.memory_space<vmem>>, vector<8x128xf32>,
    return
  }
  func.func @transform_0(%arg0: i32) -> (i32, i32) {
    %c0_i32 = arith.constant 0 : i32
    %c0_i32_0 = arith.constant 0 : i32
    return %arg0, %c0_i32 : i32, i32
  }
  func.func @transform_1(%arg0: i32) -> (i32, i32) {
    %c0_i32 = arith.constant 0 : i32
    %c0_i32_0 = arith.constant 0 : i32
    return %arg0, %c0_i32 : i32, i32
  }
  func.func @transform_2(%arg0: i32) -> (i32, i32) {
    %c0_i32 = arith.constant 0 : i32
    %c0_i32_0 = arith.constant 0 : i32
    %c0_i32_1 = arith.constant 0 : i32
    return %c0_i32, %c0_i32_0 : i32, i32
  }
  func.func @transform_3(%arg0: i32) -> (i32, i32) {
    %c0_i32 = arith.constant 0 : i32
    %c0_i32_0 = arith.constant 0 : i32
    %c0_i32_1 = arith.constant 0 : i32
    return %c0_i32, %c0_i32_0 : i32, i32
  }
  func.func @transform_4(%arg0: i32) -> (i32, i32) {
    %c0_i32 = arith.constant 0 : i32
    %c0_i32_0 = arith.constant 0 : i32
    return %arg0, %c0_i32 : i32, i32
  }
}

</mosaic_0001>

<llo_original>
// kernel: tpu_custom_call.1
$region0: #{tpu_custom_call.1}
  #allocation0 [shape = 'u32[]', space=smem, size = 0x4, offset = 0x4, fixed_abs, tag = 'smem constant byte address 0x4 - core index']
  #allocation1 [shape = 'u32[144,128]{1,0:T(1,128)}', space=vmem, size = 0x12000, scoped, tag = 'internal scratch']
  %s0 = inlined_call_operand.hbm [shape: f32[8,32], index: 0, kind: input, shape index: {}]
  %s1 = inlined_call_operand.hbm [shape: f32[8,512], index: 1, kind: input, shape index: {}]
  %s2 = inlined_call_operand.hbm [shape: bf16[1312,256], index: 2, kind: input, shape index: {}]
  %s3 = inlined_call_operand.hbm [shape: f32[8,256], index: 3, kind: input, shape index: {}]
  %s4 = inlined_call_operand.hbm [shape: f32[8,128], index: 4, kind: output, shape index: {}]
  %s5 = sld [smem:[#allocation0]]
  $region42: #{tpu_custom_call.1} parent=0
    _
  %s7 = ssub.s32 1, %s5
  %s8 = scalar_select 0, %s7, %s5
  $region1: #{tpu_custom_call.1} parent=0
    #allocation2 [shape = 'u8[4096]{0}', space=vmem, size = 0x1000, scoped, tag = 'input window, operand 0, single buffered']
    #allocation3 [shape = 's32[1]{0}', space=sflag, size = 0x4, scoped, tag = 'scoped memory for tpu_custom_call.1']
    #allocation4 [shape = 's32[1]{0}', space=sflag, size = 0x4, scoped, tag = 'scoped memory for tpu_custom_call.1']
    #allocation5 [shape = 'u8[16384]{0}', space=vmem, size = 0x4000, scoped, tag = 'input window, operand 1, single buffered']
    #allocation6 [shape = 's32[1]{0}', space=sflag, size = 0x4, scoped, tag = 'scoped memory for tpu_custom_call.1']
    #allocation7 [shape = 'u8[671744]{0}', space=vmem, size = 0xa4000, scoped, tag = 'input window, operand 2, single buffered']
    #allocation8 [shape = 'u8[8192]{0}', space=vmem, size = 0x2000, scoped, tag = 'input window, operand 3, single buffered']
    #allocation9 [shape = 's32[1]{0}', space=sflag, size = 0x4, scoped, tag = 'scoped memory for tpu_custom_call.1']
    #allocation10 [shape = 'u8[4096]{0}', space=vmem, size = 0x1000, scoped, tag = 'output window, operand 0, single buffered']
    %9 = vsyncpa [#allocation3], 0
    %10 = vsyncpa [#allocation6], 0
    %11 = vsyncpa [#allocation9], 0
    %12 = vsyncpa [#allocation4], 0
    // Predicated region
    $region2: #{tpu_custom_call.1} parent=1 // pred_check
      _
    $region3: #{tpu_custom_call.1} parent=1 // pred_check_branch
      %14 = sbr.rel (0) target = $region5
    $region4: #{tpu_custom_call.1} parent=1 // pred_region
      %s16 = ssub.s32 128, 128
      %17 = vsyncadd [#allocation3], %s16
      %s19 = sshll.u32 [#allocation2], 4
      %s20 = int_to_ptr.vmem [resolvable:$true] %s19
      %22 = dma.hbm_to_vmem [thread:$0]  %s0, 128, %s20, [#allocation3]
    $region5: #{tpu_custom_call.1} parent=1 // pred_fallthru
      _
    // Predicated region
    $region6: #{tpu_custom_call.1} parent=1 // pred_check
      _
    $region7: #{tpu_custom_call.1} parent=1 // pred_check_branch
      %24 = sbr.rel (0) target = $region9
    $region8: #{tpu_custom_call.1} parent=1 // pred_region
      %s26 = ssub.s32 512, 512
      %27 = vsyncadd [#allocation6], %s26
      %s29 = sshll.u32 [#allocation5], 4
      %s30 = int_to_ptr.vmem [resolvable:$true] %s29
      %32 = dma.hbm_to_vmem [thread:$0]  %s1, 512, %s30, [#allocation6]
    $region9: #{tpu_custom_call.1} parent=1 // pred_fallthru
      _
    // Predicated region
    $region10: #{tpu_custom_call.1} parent=1 // pred_check
      _
    $region11: #{tpu_custom_call.1} parent=1 // pred_check_branch
      %34 = sbr.rel (0) target = $region13
    $region12: #{tpu_custom_call.1} parent=1 // pred_region
      %s36 = ssub.s32 20992, 20992
      %37 = vsyncadd [#allocation6], %s36
      %s38 = sshll.u32 [#allocation7], 4
      %s39 = int_to_ptr.vmem [resolvable:$true] %s38
      %44 = dma.hbm_to_vmem [thread:$0]  %s2, 20992, %s39, [#allocation6], 128, 128, 8
    $region13: #{tpu_custom_call.1} parent=1 // pred_fallthru
      _
    // Predicated region
    $region14: #{tpu_custom_call.1} parent=1 // pred_check
      _
    $region15: #{tpu_custom_call.1} parent=1 // pred_check_branch
      %46 = sbr.rel (0) target = $region17
    $region16: #{tpu_custom_call.1} parent=1 // pred_region
      %s48 = ssub.s32 256, 256
      %49 = vsyncadd [#allocation9], %s48
      %s51 = sshll.u32 [#allocation8], 4
      %s52 = int_to_ptr.vmem [resolvable:$true] %s51
      %54 = dma.hbm_to_vmem [thread:$0]  %s3, 256, %s52, [#allocation9]
    $region17: #{tpu_custom_call.1} parent=1 // pred_fallthru
      _
    // Predicated region
    $region18: #{tpu_custom_call.1} parent=1 // pred_check
      _
    $region19: #{tpu_custom_call.1} parent=1 // pred_check_branch
      %56 = sbr.rel (0) target = $region21
    $region20: #{tpu_custom_call.1} parent=1 // pred_region
      %57 = dma.done [#allocation3], 128
    $region21: #{tpu_custom_call.1} parent=1 // pred_fallthru
      _
    // Predicated region
    $region22: #{tpu_custom_call.1} parent=1 // pred_check
      _
    $region23: #{tpu_custom_call.1} parent=1 // pred_check_branch
      %59 = sbr.rel (0) target = $region25
    $region24: #{tpu_custom_call.1} parent=1 // pred_region
      %60 = dma.done [#allocation6], 512
    $region25: #{tpu_custom_call.1} parent=1 // pred_fallthru
      _
    // Predicated region
    $region26: #{tpu_custom_call.1} parent=1 // pred_check
      _
    $region27: #{tpu_custom_call.1} parent=1 // pred_check_branch
      %62 = sbr.rel (0) target = $region29
    $region28: #{tpu_custom_call.1} parent=1 // pred_region
      %63 = dma.done [#allocation6], 20992
    $region29: #{tpu_custom_call.1} parent=1 // pred_fallthru
      _
    // Predicated region
    $region30: #{tpu_custom_call.1} parent=1 // pred_check
      _
    $region31: #{tpu_custom_call.1} parent=1 // pred_check_branch
      %65 = sbr.rel (0) target = $region33
    $region32: #{tpu_custom_call.1} parent=1 // pred_region
      %66 = dma.done [#allocation9], 256
    $region33: #{tpu_custom_call.1} parent=1 // pred_fallthru
      _
    %v68 = vld [vmem:[#allocation7] sm:$0xff]
    %v69 = vld [vmem:[#allocation7 + $0x8] sm:$0xff]
    %v70 = vld [vmem:[#allocation7 + $0x10] sm:$0xff]
    %v71 = vld [vmem:[#allocation7 + $0x18] sm:$0xff]
    %v72 = vld [vmem:[#allocation7 + $0x20] sm:$0xff]
    %v73 = vld [vmem:[#allocation7 + $0x28] sm:$0xff]
    %v74 = vld [vmem:[#allocation7 + $0x30] sm:$0xff]
    %v75 = vld [vmem:[#allocation7 + $0x38] sm:$0xff]
    %v76 = vld [vmem:[#allocation7 + $0x40] sm:$0xff]
    %v77 = vld [vmem:[#allocation7 + $0x48] sm:$0xff]
    %v78 = vld [vmem:[#allocation7 + $0x50] sm:$0xff]
    %v79 = vld [vmem:[#allocation7 + $0x58] sm:$0xff]
    %v80 = vld [vmem:[#allocation7 + $0x60] sm:$0xff]
    %v81 = vld [vmem:[#allocation7 + $0x68] sm:$0xff]
    %v82 = vld [vmem:[#allocation7 + $0x70] sm:$0xff]
    %v83 = vld [vmem:[#allocation7 + $0x78] sm:$0xff]
    %v84 = vld [vmem:[#allocation7 + $0x80] sm:$0xff]
    %v85 = vld [vmem:[#allocation7 + $0x88] sm:$0xff]
    %v86 = vld [vmem:[#allocation7 + $0x90] sm:$0xff]
    %v87 = vld [vmem:[#allocation7 + $0x98] sm:$0xff]
    %v88 = vld [vmem:[#allocation7 + $0xa0] sm:$0xff]
    %v89 = vld [vmem:[#allocation7 + $0xa8] sm:$0xff]
    %v90 = vld [vmem:[#allocation7 + $0xb0] sm:$0xff]
    %v91 = vld [vmem:[#allocation7 + $0xb8] sm:$0xff]
    %v92 = vld [vmem:[#allocation7 + $0xc0] sm:$0xff]
    %v93 = vld [vmem:[#allocation7 + $0xc8] sm:$0xff]
    %v94 = vld [vmem:[#allocation7 + $0xd0] sm:$0xff]
    %v95 = vld [vmem:[#allocation7 + $0xd8] sm:$0xff]
    %v96 = vld [vmem:[#allocation7 + $0xe0] sm:$0xff]
    %v97 = vld [vmem:[#allocation7 + $0xe8] sm:$0xff]
    %v98 = vld [vmem:[#allocation7 + $0xf0] sm:$0xff]
    %v99 = vld [vmem:[#allocation7 + $0xf8] sm:$0xff]
    %v100 = vld [vmem:[#allocation7 + $0x100] sm:$0xff]
    %v101 = vld [vmem:[#allocation7 + $0x108] sm:$0xff]
    %v102 = vld [vmem:[#allocation7 + $0x110] sm:$0xff]
    %v103 = vld [vmem:[#allocation7 + $0x118] sm:$0xff]
    %v104 = vld [vmem:[#allocation7 + $0x120] sm:$0xff]
    %v105 = vld [vmem:[#allocation7 + $0x128] sm:$0xff]
    %v106 = vld [vmem:[#allocation7 + $0x130] sm:$0xff]
    %v107 = vld [vmem:[#allocation7 + $0x138] sm:$0xff]
    %v108 = vld [vmem:[#allocation7 + $0x140] sm:$0xff]
    %v109 = vld [vmem:[#allocation7 + $0x148] sm:$0xff]
    %v110 = vld [vmem:[#allocation7 + $0x150] sm:$0xff]
    %v111 = vld [vmem:[#allocation7 + $0x158] sm:$0xff]
    %v112 = vld [vmem:[#allocation7 + $0x160] sm:$0xff]
    %v113 = vld [vmem:[#allocation7 + $0x168] sm:$0xff]
    %v114 = vld [vmem:[#allocation7 + $0x170] sm:$0xff]
    %v115 = vld [vmem:[#allocation7 + $0x178] sm:$0xff]
    %v116 = vld [vmem:[#allocation7 + $0x180] sm:$0xff]
    %v117 = vld [vmem:[#allocation7 + $0x188] sm:$0xff]
    %v118 = vld [vmem:[#allocation7 + $0x190] sm:$0xff]
    %v119 = vld [vmem:[#allocation7 + $0x198] sm:$0xff]
    %v120 = vld [vmem:[#allocation7 + $0x1a0] sm:$0xff]
    %v121 = vld [vmem:[#allocation7 + $0x1a8] sm:$0xff]
    %v122 = vld [vmem:[#allocation7 + $0x1b0] sm:$0xff]
    %v123 = vld [vmem:[#allocation7 + $0x1b8] sm:$0xff]
    %v124 = vld [vmem:[#allocation7 + $0x1c0] sm:$0xff]
    %v125 = vld [vmem:[#allocation7 + $0x1c8] sm:$0xff]
    %v126 = vld [vmem:[#allocation7 + $0x1d0] sm:$0xff]
    %v127 = vld [vmem:[#allocation7 + $0x1d8] sm:$0xff]
    %v128 = vld [vmem:[#allocation7 + $0x1e0] sm:$0xff]
    %v129 = vld [vmem:[#allocation7 + $0x1e8] sm:$0xff]
    %v130 = vld [vmem:[#allocation7 + $0x1f0] sm:$0xff]
    %v131 = vld [vmem:[#allocation7 + $0x1f8] sm:$0xff]
    %v132 = vld [vmem:[#allocation7 + $0x200] sm:$0xff]
    %v133 = vld [vmem:[#allocation7 + $0x208] sm:$0xff]
    %v134 = vld [vmem:[#allocation7 + $0x210] sm:$0xff]
    %v135 = vld [vmem:[#allocation7 + $0x218] sm:$0xff]
    %v136 = vld [vmem:[#allocation7 + $0x220] sm:$0xff]
    %v137 = vld [vmem:[#allocation7 + $0x228] sm:$0xff]
    %v138 = vld [vmem:[#allocation7 + $0x230] sm:$0xff]
    %v139 = vld [vmem:[#allocation7 + $0x238] sm:$0xff]
    %v140 = vld [vmem:[#allocation7 + $0x240] sm:$0xff]
    %v141 = vld [vmem:[#allocation7 + $0x248] sm:$0xff]
    %v142 = vld [vmem:[#allocation7 + $0x250] sm:$0xff]
    %v143 = vld [vmem:[#allocation7 + $0x258] sm:$0xff]
    %v144 = vld [vmem:[#allocation7 + $0x260] sm:$0xff]
    %v145 = vld [vmem:[#allocation7 + $0x268] sm:$0xff]
    %v146 = vld [vmem:[#allocation7 + $0x270] sm:$0xff]
    %v147 = vld [vmem:[#allocation7 + $0x278] sm:$0xff]
    %v148 = vld [vmem:[#allocation7 + $0x280] sm:$0xff]
    %v149 = vld [vmem:[#allocation7 + $0x288] sm:$0xff]
    %v150 = vld [vmem:[#allocation7 + $0x290] sm:$0xff]
    %v151 = vld [vmem:[#allocation7 + $0x298] sm:$0xff]
    %v152 = vld [vmem:[#allocation7 + $0x2a0] sm:$0xff]
    %v153 = vld [vmem:[#allocation7 + $0x2a8] sm:$0xff]
    %v154 = vld [vmem:[#allocation7 + $0x2b0] sm:$0xff]
    %v155 = vld [vmem:[#allocation7 + $0x2b8] sm:$0xff]
    %v156 = vld [vmem:[#allocation7 + $0x2c0] sm:$0xff]
    %v157 = vld [vmem:[#allocation7 + $0x2c8] sm:$0xff]
    %v158 = vld [vmem:[#allocation7 + $0x2d0] sm:$0xff]
    %v159 = vld [vmem:[#allocation7 + $0x2d8] sm:$0xff]
    %v160 = vld [vmem:[#allocation7 + $0x2e0] sm:$0xff]
    %v161 = vld [vmem:[#allocation7 + $0x2e8] sm:$0xff]
    %v162 = vld [vmem:[#allocation7 + $0x2f0] sm:$0xff]
    %v163 = vld [vmem:[#allocation7 + $0x2f8] sm:$0xff]
    %v164 = vld [vmem:[#allocation7 + $0x300] sm:$0xff]
    %v165 = vld [vmem:[#allocation7 + $0x308] sm:$0xff]
    %v166 = vld [vmem:[#allocation7 + $0x310] sm:$0xff]
    %v167 = vld [vmem:[#allocation7 + $0x318] sm:$0xff]
    %v168 = vld [vmem:[#allocation7 + $0x320] sm:$0xff]
    %v169 = vld [vmem:[#allocation7 + $0x328] sm:$0xff]
    %v170 = vld [vmem:[#allocation7 + $0x330] sm:$0xff]
    %v171 = vld [vmem:[#allocation7 + $0x338] sm:$0xff]
    %v172 = vld [vmem:[#allocation7 + $0x340] sm:$0xff]
    %v173 = vld [vmem:[#allocation7 + $0x348] sm:$0xff]
    %v174 = vld [vmem:[#allocation7 + $0x350] sm:$0xff]
    %v175 = vld [vmem:[#allocation7 + $0x358] sm:$0xff]
    %v176 = vld [vmem:[#allocation7 + $0x360] sm:$0xff]
    %v177 = vld [vmem:[#allocation7 + $0x368] sm:$0xff]
    %v178 = vld [vmem:[#allocation7 + $0x370] sm:$0xff]
    %v179 = vld [vmem:[#allocation7 + $0x378] sm:$0xff]
    %v180 = vld [vmem:[#allocation7 + $0x380] sm:$0xff]
    %v181 = vld [vmem:[#allocation7 + $0x388] sm:$0xff]
    %v182 = vld [vmem:[#allocation7 + $0x390] sm:$0xff]
    %v183 = vld [vmem:[#allocation7 + $0x398] sm:$0xff]
    %v184 = vld [vmem:[#allocation7 + $0x3a0] sm:$0xff]
    %v185 = vld [vmem:[#allocation7 + $0x3a8] sm:$0xff]
    %v186 = vld [vmem:[#allocation7 + $0x3b0] sm:$0xff]
    %v187 = vld [vmem:[#allocation7 + $0x3b8] sm:$0xff]
    %v188 = vld [vmem:[#allocation7 + $0x3c0] sm:$0xff]
    %v189 = vld [vmem:[#allocation7 + $0x3c8] sm:$0xff]
    %v190 = vld [vmem:[#allocation7 + $0x3d0] sm:$0xff]
    %v191 = vld [vmem:[#allocation7 + $0x3d8] sm:$0xff]
    %v192 = vld [vmem:[#allocation7 + $0x3e0] sm:$0xff]
    %v193 = vld [vmem:[#allocation7 + $0x3e8] sm:$0xff]
    %v194 = vld [vmem:[#allocation7 + $0x3f0] sm:$0xff]
    %v195 = vld [vmem:[#allocation7 + $0x3f8] sm:$0xff]
    %v196 = vld [vmem:[#allocation7 + $0x400] sm:$0xff]
    %v197 = vld [vmem:[#allocation7 + $0x408] sm:$0xff]
    %v198 = vld [vmem:[#allocation7 + $0x410] sm:$0xff]
    %v199 = vld [vmem:[#allocation7 + $0x418] sm:$0xff]
    %v200 = vld [vmem:[#allocation7 + $0x420] sm:$0xf]
    %v201 = vld [vmem:[#allocation7 + $0x428] sm:$0xf]
    %v202 = vld [vmem:[#allocation7 + $0x430] sm:$0xf]
    %v203 = vld [vmem:[#allocation7 + $0x438] sm:$0xf]
    %v204 = vld [vmem:[#allocation7 + $0x440] sm:$0xf]
    %v205 = vld [vmem:[#allocation7 + $0x448] sm:$0xf]
    %v206 = vld [vmem:[#allocation7 + $0x450] sm:$0xf]
    %v207 = vld [vmem:[#allocation7 + $0x458] sm:$0xf]
    %v208 = vld [vmem:[#allocation7 + $0x460] sm:$0xf]
    %v209 = vld [vmem:[#allocation7 + $0x468] sm:$0xf]
    %v210 = vld [vmem:[#allocation7 + $0x470] sm:$0xf]
    %v211 = vld [vmem:[#allocation7 + $0x478] sm:$0xf]
    %v212 = vld [vmem:[#allocation7 + $0x480] sm:$0xf]
    %v213 = vld [vmem:[#allocation7 + $0x488] sm:$0xf]
    %v214 = vld [vmem:[#allocation7 + $0x490] sm:$0xf]
    %v215 = vld [vmem:[#allocation7 + $0x498] sm:$0xf]
    %v216 = vld [vmem:[#allocation7 + $0x4a0] sm:$0xf]
    %v217 = vld [vmem:[#allocation7 + $0x4a8] sm:$0xf]
    %v218 = vld [vmem:[#allocation7 + $0x4b0] sm:$0xf]
    %v219 = vld [vmem:[#allocation7 + $0x4b8] sm:$0xf]
    %v220 = vld [vmem:[#allocation7 + $0x4c0] sm:$0xf]
    %v221 = vld [vmem:[#allocation7 + $0x4c8] sm:$0xf]
    %v222 = vld [vmem:[#allocation7 + $0x4d0] sm:$0xf]
    %v223 = vld [vmem:[#allocation7 + $0x4d8] sm:$0xf]
    %v224 = vld [vmem:[#allocation7 + $0x4e0] sm:$0xf]
    %v225 = vld [vmem:[#allocation7 + $0x4e8] sm:$0xf]
    %v226 = vld [vmem:[#allocation7 + $0x4f0] sm:$0xf]
    %v227 = vld [vmem:[#allocation7 + $0x4f8] sm:$0xf]
    %v228 = vld [vmem:[#allocation7 + $0x500] sm:$0xf]
    %v229 = vld [vmem:[#allocation7 + $0x508] sm:$0xf]
    %v230 = vld [vmem:[#allocation7 + $0x510] sm:$0xf]
    %v231 = vld [vmem:[#allocation7 + $0x518] sm:$0xf]
    %v232 = vld [vmem:[#allocation8] ss:$8 sm:$0x3]
    %s233 = scalar_lea.vmem [#allocation8], 1
    %v234 = vld [vmem:[%s233] ss:$8 sm:$0x3]
    %s235 = scalar_lea.vmem [#allocation8], 2
    %v236 = vld [vmem:[%s235] ss:$8 sm:$0x3]
    %s237 = scalar_lea.vmem [#allocation8], 3
    %v238 = vld [vmem:[%s237] ss:$8 sm:$0x3]
    %v239 = vld [vmem:[#allocation8 + $0x4] ss:$0 sm:$0xff]
    %v240 = vld [vmem:[#allocation2] sm:$0xff]
    %v241 = vpack.c.bf16 %v240, %v240
    %v243 = vlaneseq
    %v244 = vshrl.u32 %v243, 7
    %v245 = vsub.s32 0, %v244
    %v246 = vrot.slane %v232, %v245
    %v247 = vlaneseq
    %v248 = vshrl.u32 %v247, 7
    %v249 = vsub.s32 1, %v248
    %v250 = vrot.slane %v232, %v249
    %v257 = vunpack.c.l.b16 %v68
    %v258 = vunpack.c.h.b16 %v68
    %v259 = vunpack.c.l.b16 %v69
    %v260 = vunpack.c.h.b16 %v69
    %v261 = vunpack.c.l.b16 %v70
    %v262 = vunpack.c.h.b16 %v70
    %v263 = vunpack.c.l.b16 %v71
    %v264 = vunpack.c.h.b16 %v71
    %v265 = vpack.c.b16 %v259, %v257
    %v266 = vpack.c.b16 %v260, %v258
    %v267 = vpack.c.b16 %v263, %v261
    %v268 = vpack.c.b16 %v264, %v262
    %vm273 = vcmask 261120
    %v275 = vsel %vm273, %v241, 0
    %277 = vmatprep.subr.bf16.mxu0 %v266
    %278 = vmatpush1.bf16.msra.mxu0 %v265
    %279 = vmatprep.subr.bf16.mxu0 %v268
    %280 = vmatpush1.bf16.msra.mxu0 %v267
    %281 = vmatprep.subr.bf16.mxu0 0
    %282 = vmatpush1.bf16.msra.mxu0 0
    %283 = vmatprep.subr.bf16.mxu0 0
    %284 = vmatpush1.bf16.msra.mxu0 0
    %285 = vmatprep.subr.bf16.mxu0 0
    %286 = vmatpush1.bf16.msra.mxu0 0
    %287 = vmatprep.subr.bf16.mxu0 0
    %288 = vmatpush1.bf16.msra.mxu0 0
    %289 = vmatprep.subr.bf16.mxu0 0
    %290 = vmatpush1.bf16.msra.mxu0 0
    %291 = vmatprep.subr.bf16.mxu0 0
    %292 = vmatpush1.bf16.msra.mxu0 0
    %293 = vmatprep.subr.bf16.mxu0 0
    %294 = vmatpush1.bf16.msra.mxu0 0
    %295 = vmatprep.subr.bf16.mxu0 0
    %296 = vmatpush1.bf16.msra.mxu0 0
    %297 = vmatprep.subr.bf16.mxu0 0
    %298 = vmatpush1.bf16.msra.mxu0 0
    %299 = vmatprep.subr.bf16.mxu0 0
    %300 = vmatpush1.bf16.msra.mxu0 0
    %301 = vmatprep.subr.bf16.mxu0 0
    %302 = vmatpush1.bf16.msra.mxu0 0
    %303 = vmatprep.subr.bf16.mxu0 0
    %304 = vmatpush1.bf16.msra.mxu0 0
    %305 = vmatprep.subr.bf16.mxu0 0
    %306 = vmatpush1.bf16.msra.mxu0 0
    %307 = vmatprep.subr.bf16.mxu0 0
    %308 = vmatpush1.bf16.msra.mxu0 0
    %309 = vmatprep.mubr.bf16.mxu0 0
    %310 = vmatmul.mubr.bf16.gmra.mrb[0].mxu0 %v275
    %v311 = vpop.f32.mrb[0].mxu0
    %v312 = vadd.f32 %v246, %v311
    %v313 = vpop.f32.mrb[0].mxu0
    %v314 = vadd.f32 %v250, %v313
    %v315 = vpop.f32.mrb[0].mxu0
    %v316 = vpop.f32.mrb[0].mxu0
    %317 = vdwg.mxu0
    %v318 = vmax.f32 %v312, 0.0
    %v319 = vmax.f32 %v314, 0.0
    %v320 = vld [vmem:[#allocation5] sm:$0xff]
    %v321 = vld [vmem:[#allocation5 + $0x8] sm:$0xff]
    %v322 = vld [vmem:[#allocation5 + $0x10] sm:$0xff]
    %v323 = vld [vmem:[#allocation5 + $0x18] sm:$0xff]
    %v324 = vand.u32 2147483647, %v320
    %vm325 = vcmp.le.f32.partialorder %v324, 0.7853982
    %vm326 = vcmp.lt.s32.totalorder %v320, 0
    %v327 = vand.u32 %v320, 2139095040
    %v328 = vshrl.u32 %v327, 23
    %v329 = vsub.s32 %v328, 127
    %v330 = vand.u32 2147483647, %v320
    %v331 = vand.u32 %v330, 8388607
    %v332 = vor.u32 %v331, 8388608
    %v333 = vsub.s32 0, %v332
    %v334 = vadd.s32 %v329, 1
    %vm335 = vcmp.gt.s32.totalorder %v334, 0
    %v336 = vsel %vm335, %v334, 0
    %v337 = vshrl.u32 %v336, 5
    %v338 = vand.u32 %v336, 31
    %v339 = vsub.s32 32, %v338
    %v340 = vshrl.u32 683565275, %v339
    %v341 = vshll.u32 683565275, %v338
    %v342 = vshrl.u32 2475754826, %v339
    %v343 = vor.u32 %v341, %v342
    %v344 = vshll.u32 2475754826, %v338
    %v345 = vshrl.u32 2131351028, %v339
    %v346 = vor.u32 %v344, %v345
    %v347 = vshll.u32 2131351028, %v338
    %v348 = vshrl.u32 2102212464, %v339
    %v349 = vor.u32 %v347, %v348
    %v350 = vshll.u32 2102212464, %v338
    %v351 = vshrl.u32 920167782, %v339
    %v352 = vor.u32 %v350, %v351
    %v353 = vshll.u32 920167782, %v338
    %v354 = vshrl.u32 1326507024, %v339
    %v355 = vor.u32 %v353, %v354
    %vm356 = vcmp.lt.s32.totalorder %v337, 1
    %vm357 = vcmp.lt.s32.totalorder %v337, 2
    %vm358 = vcmp.lt.s32.totalorder %v337, 3
    %vm359 = vcmp.lt.s32.totalorder %v337, 4
    %v360 = vsel %vm356, %v340, %v343
    %v361 = vsel %vm359, %v349, 2102212464
    %v362 = vsel %vm358, %v346, %v361
    %v363 = vsel %vm357, %v360, %v362
    %v364 = vsel %vm356, %v343, %v346
    %v365 = vsel %vm359, %v352, 920167782
    %v366 = vsel %vm358, %v349, %v365
    %v367 = vsel %vm357, %v364, %v366
    %v368 = vsel %vm356, %v346, %v349
    %v369 = vsel %vm359, %v355, 1326507024
    %v370 = vsel %vm358, %v352, %v369
    %v371 = vsel %vm357, %v368, %v370
    %v372 = vshll.u32 %v332, 8
    %v373 = vmul.u32.u64.compose %v372, %v371
    %v374 = vextract.low.u32 %v373
    %v375 = vextract.high.u32 %v373
    %v376 = vmul.u32.u64.compose %v372, %v367
    %v377 = vextract.low.u32 %v376
    %v378 = vextract.high.u32 %v376
    %v379 = vmul.u32 %v372, %v363
    %v380 = vadd.s32 %v375, %v377
    %vm381 = vc.u32 %v375, %v377
    %v382 = vadd.s32 %v378, 1
    %v383 = vsel %vm381, %v382, %v378
    %v384 = vadd.s32 %v379, %v383
    %v385 = vadd.s32 %v384, 536870912
    %v386 = vshrl.u32 %v385, 30
    %v387 = vshll.u32 %v386, 30
    %v388 = vsub.s32 %v384, %v387
    %vm389 = vcmp.lt.s32.totalorder %v388, 0
    %v390 = vsub.s32 0, %v388
    %v391 = vsel %vm389, %v390, %v388
    %v392 = vclz %v391
    %v393 = vsub.s32 %v392, 2
    %vm394 = vcmp.gt.s32.totalorder 0, %v393
    %v395 = vsel %vm394, 0, %v393
    %v396 = vsub.s32 32, %v395
    %v397 = vshll.u32 %v388, %v395
    %v398 = vshrl.u32 %v380, %v396
    %v399 = vor.u32 %v397, %v398
    %v400 = vsub.s32 4294967266, %v395
    %v401 = vadd.s32 %v400, 127
    %v402 = vshll.u32 %v401, 23
    %v403 = vor.u32 4788187, %v402
    %v404 = vand.u32 2147483647, %v403
    %v406 = vcvt.s32.f32 %v399
    %v407 = vmul.f32 %v406, %v404
    %v408 = vxor.u32 %v407, 2147483648
    %v409 = vsel %vm326, %v408, %v407
    %v410 = vsub.s32 4, %v386
    %v411 = vsel %vm326, %v410, %v386
    %v412 = vsel %vm325, %v320, %v409
    %v413 = vsel %vm325, 0, %v411
    %v414 = vcosq.f32.pop %v412
    %v415 = vsinq.f32.pop %v412
    %vm416 = vweird.f32 %v320
    %v417 = vand.u32 %v413, 3
    %vm418 = vcmp.lt.s32.totalorder %v417, 2
    %vm419 = vcmp.eq.s32.totalorder %v417, 0
    %v420 = vxor.u32 %v415, 2147483648
    %v421 = vsel %vm419, %v414, %v420
    %vm422 = vcmp.eq.s32.totalorder %v417, 2
    %v423 = vxor.u32 %v414, 2147483648
    %v424 = vsel %vm422, %v423, %v415
    %v425 = vsel %vm418, %v421, %v424
    %v426 = vsel %vm416, nan, %v425
    %v427 = vand.u32 2147483647, %v321
    %vm428 = vcmp.le.f32.partialorder %v427, 0.7853982
    %vm429 = vcmp.lt.s32.totalorder %v321, 0
    %v430 = vand.u32 %v321, 2139095040
    %v431 = vshrl.u32 %v430, 23
    %v432 = vsub.s32 %v431, 127
    %v433 = vand.u32 2147483647, %v321
    %v434 = vand.u32 %v433, 8388607
    %v435 = vor.u32 %v434, 8388608
    %v436 = vsub.s32 0, %v435
    %v437 = vadd.s32 %v432, 1
    %vm438 = vcmp.gt.s32.totalorder %v437, 0
    %v439 = vsel %vm438, %v437, 0
    %v440 = vshrl.u32 %v439, 5
    %v441 = vand.u32 %v439, 31
    %v442 = vsub.s32 32, %v441
    %v443 = vshrl.u32 683565275, %v442
    %v444 = vshll.u32 683565275, %v441
    %v445 = vshrl.u32 2475754826, %v442
    %v446 = vor.u32 %v444, %v445
    %v447 = vshll.u32 2475754826, %v441
    %v448 = vshrl.u32 2131351028, %v442
    %v449 = vor.u32 %v447, %v448
    %v450 = vshll.u32 2131351028, %v441
    %v451 = vshrl.u32 2102212464, %v442
    %v452 = vor.u32 %v450, %v451
    %v453 = vshll.u32 2102212464, %v441
    %v454 = vshrl.u32 920167782, %v442
    %v455 = vor.u32 %v453, %v454
    %v456 = vshll.u32 920167782, %v441
    %v457 = vshrl.u32 1326507024, %v442
    %v458 = vor.u32 %v456, %v457
    %vm459 = vcmp.lt.s32.totalorder %v440, 1
    %vm460 = vcmp.lt.s32.totalorder %v440, 2
    %vm461 = vcmp.lt.s32.totalorder %v440, 3
    %vm462 = vcmp.lt.s32.totalorder %v440, 4
    %v463 = vsel %vm459, %v443, %v446
    %v464 = vsel %vm462, %v452, 2102212464
    %v465 = vsel %vm461, %v449, %v464
    %v466 = vsel %vm460, %v463, %v465
    %v467 = vsel %vm459, %v446, %v449
    %v468 = vsel %vm462, %v455, 920167782
    %v469 = vsel %vm461, %v452, %v468
    %v470 = vsel %vm460, %v467, %v469
    %v471 = vsel %vm459, %v449, %v452
    %v472 = vsel %vm462, %v458, 1326507024
    %v473 = vsel %vm461, %v455, %v472
    %v474 = vsel %vm460, %v471, %v473
    %v475 = vshll.u32 %v435, 8
    %v476 = vmul.u32.u64.compose %v475, %v474
    %v477 = vextract.low.u32 %v476
    %v478 = vextract.high.u32 %v476
    %v479 = vmul.u32.u64.compose %v475, %v470
    %v480 = vextract.low.u32 %v479
    %v481 = vextract.high.u32 %v479
    %v482 = vmul.u32 %v475, %v466
    %v483 = vadd.s32 %v478, %v480
    %vm484 = vc.u32 %v478, %v480
    %v485 = vadd.s32 %v481, 1
    %v486 = vsel %vm484, %v485, %v481
    %v487 = vadd.s32 %v482, %v486
    %v488 = vadd.s32 %v487, 536870912
    %v489 = vshrl.u32 %v488, 30
    %v490 = vshll.u32 %v489, 30
    %v491 = vsub.s32 %v487, %v490
    %vm492 = vcmp.lt.s32.totalorder %v491, 0
    %v493 = vsub.s32 0, %v491
    %v494 = vsel %vm492, %v493, %v491
    %v495 = vclz %v494
    %v496 = vsub.s32 %v495, 2
    %vm497 = vcmp.gt.s32.totalorder 0, %v496
    %v498 = vsel %vm497, 0, %v496
    %v499 = vsub.s32 32, %v498
    %v500 = vshll.u32 %v491, %v498
    %v501 = vshrl.u32 %v483, %v499
    %v502 = vor.u32 %v500, %v501
    %v503 = vsub.s32 4294967266, %v498
    %v504 = vadd.s32 %v503, 127
    %v505 = vshll.u32 %v504, 23
    %v506 = vor.u32 4788187, %v505
    %v507 = vand.u32 2147483647, %v506
    %v509 = vcvt.s32.f32 %v502
    %v510 = vmul.f32 %v509, %v507
    %v511 = vxor.u32 %v510, 2147483648
    %v512 = vsel %vm429, %v511, %v510
    %v513 = vsub.s32 4, %v489
    %v514 = vsel %vm429, %v513, %v489
    %v515 = vsel %vm428, %v321, %v512
    %v516 = vsel %vm428, 0, %v514
    %v517 = vcosq.f32.pop %v515
    %v518 = vsinq.f32.pop %v515
    %vm519 = vweird.f32 %v321
    %v520 = vand.u32 %v516, 3
    %vm521 = vcmp.lt.s32.totalorder %v520, 2
    %vm522 = vcmp.eq.s32.totalorder %v520, 0
    %v523 = vxor.u32 %v518, 2147483648
    %v524 = vsel %vm522, %v517, %v523
    %vm525 = vcmp.eq.s32.totalorder %v520, 2
    %v526 = vxor.u32 %v517, 2147483648
    %v527 = vsel %vm525, %v526, %v518
    %v528 = vsel %vm521, %v524, %v527
    %v529 = vsel %vm519, nan, %v528
    %v530 = vand.u32 2147483647, %v322
    %vm531 = vcmp.le.f32.partialorder %v530, 0.7853982
    %vm532 = vcmp.lt.s32.totalorder %v322, 0
    %v533 = vand.u32 %v322, 2139095040
    %v534 = vshrl.u32 %v533, 23
    %v535 = vsub.s32 %v534, 127
    %v536 = vand.u32 2147483647, %v322
    %v537 = vand.u32 %v536, 8388607
    %v538 = vor.u32 %v537, 8388608
    %v539 = vsub.s32 0, %v538
    %v540 = vadd.s32 %v535, 1
    %vm541 = vcmp.gt.s32.totalorder %v540, 0
    %v542 = vsel %vm541, %v540, 0
    %v543 = vshrl.u32 %v542, 5
    %v544 = vand.u32 %v542, 31
    %v545 = vsub.s32 32, %v544
    %v546 = vshrl.u32 683565275, %v545
    %v547 = vshll.u32 683565275, %v544
    %v548 = vshrl.u32 2475754826, %v545
    %v549 = vor.u32 %v547, %v548
    %v550 = vshll.u32 2475754826, %v544
    %v551 = vshrl.u32 2131351028, %v545
    %v552 = vor.u32 %v550, %v551
    %v553 = vshll.u32 2131351028, %v544
    %v554 = vshrl.u32 2102212464, %v545
    %v555 = vor.u32 %v553, %v554
    %v556 = vshll.u32 2102212464, %v544
    %v557 = vshrl.u32 920167782, %v545
    %v558 = vor.u32 %v556, %v557
    %v559 = vshll.u32 920167782, %v544
    %v560 = vshrl.u32 1326507024, %v545
    %v561 = vor.u32 %v559, %v560
    %vm562 = vcmp.lt.s32.totalorder %v543, 1
    %vm563 = vcmp.lt.s32.totalorder %v543, 2
    %vm564 = vcmp.lt.s32.totalorder %v543, 3
    %vm565 = vcmp.lt.s32.totalorder %v543, 4
    %v566 = vsel %vm562, %v546, %v549
    %v567 = vsel %vm565, %v555, 2102212464
    %v568 = vsel %vm564, %v552, %v567
    %v569 = vsel %vm563, %v566, %v568
    %v570 = vsel %vm562, %v549, %v552
    %v571 = vsel %vm565, %v558, 920167782
    %v572 = vsel %vm564, %v555, %v571
    %v573 = vsel %vm563, %v570, %v572
    %v574 = vsel %vm562, %v552, %v555
    %v575 = vsel %vm565, %v561, 1326507024
    %v576 = vsel %vm564, %v558, %v575
    %v577 = vsel %vm563, %v574, %v576
    %v578 = vshll.u32 %v538, 8
    %v579 = vmul.u32.u64.compose %v578, %v577
    %v580 = vextract.low.u32 %v579
    %v581 = vextract.high.u32 %v579
    %v582 = vmul.u32.u64.compose %v578, %v573
    %v583 = vextract.low.u32 %v582
    %v584 = vextract.high.u32 %v582
    %v585 = vmul.u32 %v578, %v569
    %v586 = vadd.s32 %v581, %v583
    %vm587 = vc.u32 %v581, %v583
    %v588 = vadd.s32 %v584, 1
    %v589 = vsel %vm587, %v588, %v584
    %v590 = vadd.s32 %v585, %v589
    %v591 = vadd.s32 %v590, 536870912
    %v592 = vshrl.u32 %v591, 30
    %v593 = vshll.u32 %v592, 30
    %v594 = vsub.s32 %v590, %v593
    %vm595 = vcmp.lt.s32.totalorder %v594, 0
    %v596 = vsub.s32 0, %v594
    %v597 = vsel %vm595, %v596, %v594
    %v598 = vclz %v597
    %v599 = vsub.s32 %v598, 2
    %vm600 = vcmp.gt.s32.totalorder 0, %v599
    %v601 = vsel %vm600, 0, %v599
    %v602 = vsub.s32 32, %v601
    %v603 = vshll.u32 %v594, %v601
    %v604 = vshrl.u32 %v586, %v602
    %v605 = vor.u32 %v603, %v604
    %v606 = vsub.s32 4294967266, %v601
    %v607 = vadd.s32 %v606, 127
    %v608 = vshll.u32 %v607, 23
    %v609 = vor.u32 4788187, %v608
    %v610 = vand.u32 2147483647, %v609
    %v612 = vcvt.s32.f32 %v605
    %v613 = vmul.f32 %v612, %v610
    %v614 = vxor.u32 %v613, 2147483648
    %v615 = vsel %vm532, %v614, %v613
    %v616 = vsub.s32 4, %v592
    %v617 = vsel %vm532, %v616, %v592
    %v618 = vsel %vm531, %v322, %v615
    %v619 = vsel %vm531, 0, %v617
    %v620 = vcosq.f32.pop %v618
    %v621 = vsinq.f32.pop %v618
    %vm622 = vweird.f32 %v322
    %v623 = vand.u32 %v619, 3
    %vm624 = vcmp.lt.s32.totalorder %v623, 2
    %vm625 = vcmp.eq.s32.totalorder %v623, 0
    %v626 = vxor.u32 %v621, 2147483648
    %v627 = vsel %vm625, %v620, %v626
    %vm628 = vcmp.eq.s32.totalorder %v623, 2
    %v629 = vxor.u32 %v620, 2147483648
    %v630 = vsel %vm628, %v629, %v621
    %v631 = vsel %vm624, %v627, %v630
    %v632 = vsel %vm622, nan, %v631
    %v633 = vand.u32 2147483647, %v323
    %vm634 = vcmp.le.f32.partialorder %v633, 0.7853982
    %vm635 = vcmp.lt.s32.totalorder %v323, 0
    %v636 = vand.u32 %v323, 2139095040
    %v637 = vshrl.u32 %v636, 23
    %v638 = vsub.s32 %v637, 127
    %v639 = vand.u32 2147483647, %v323
    %v640 = vand.u32 %v639, 8388607
    %v641 = vor.u32 %v640, 8388608
    %v642 = vsub.s32 0, %v641
    %v643 = vadd.s32 %v638, 1
    %vm644 = vcmp.gt.s32.totalorder %v643, 0
    %v645 = vsel %vm644, %v643, 0
    %v646 = vshrl.u32 %v645, 5
    %v647 = vand.u32 %v645, 31
    %v648 = vsub.s32 32, %v647
    %v649 = vshrl.u32 683565275, %v648
    %v650 = vshll.u32 683565275, %v647
    %v651 = vshrl.u32 2475754826, %v648
    %v652 = vor.u32 %v650, %v651
    %v653 = vshll.u32 2475754826, %v647
    %v654 = vshrl.u32 2131351028, %v648
    %v655 = vor.u32 %v653, %v654
    %v656 = vshll.u32 2131351028, %v647
    %v657 = vshrl.u32 2102212464, %v648
    %v658 = vor.u32 %v656, %v657
    %v659 = vshll.u32 2102212464, %v647
    %v660 = vshrl.u32 920167782, %v648
    %v661 = vor.u32 %v659, %v660
    %v662 = vshll.u32 920167782, %v647
    %v663 = vshrl.u32 1326507024, %v648
    %v664 = vor.u32 %v662, %v663
    %vm665 = vcmp.lt.s32.totalorder %v646, 1
    %vm666 = vcmp.lt.s32.totalorder %v646, 2
    %vm667 = vcmp.lt.s32.totalorder %v646, 3
    %vm668 = vcmp.lt.s32.totalorder %v646, 4
    %v669 = vsel %vm665, %v649, %v652
    %v670 = vsel %vm668, %v658, 2102212464
    %v671 = vsel %vm667, %v655, %v670
    %v672 = vsel %vm666, %v669, %v671
    %v673 = vsel %vm665, %v652, %v655
    %v674 = vsel %vm668, %v661, 920167782
    %v675 = vsel %vm667, %v658, %v674
    %v676 = vsel %vm666, %v673, %v675
    %v677 = vsel %vm665, %v655, %v658
    %v678 = vsel %vm668, %v664, 1326507024
    %v679 = vsel %vm667, %v661, %v678
    %v680 = vsel %vm666, %v677, %v679
    %v681 = vshll.u32 %v641, 8
    %v682 = vmul.u32.u64.compose %v681, %v680
    %v683 = vextract.low.u32 %v682
    %v684 = vextract.high.u32 %v682
    %v685 = vmul.u32.u64.compose %v681, %v676
    %v686 = vextract.low.u32 %v685
    %v687 = vextract.high.u32 %v685
    %v688 = vmul.u32 %v681, %v672
    %v689 = vadd.s32 %v684, %v686
    %vm690 = vc.u32 %v684, %v686
    %v691 = vadd.s32 %v687, 1
    %v692 = vsel %vm690, %v691, %v687
    %v693 = vadd.s32 %v688, %v692
    %v694 = vadd.s32 %v693, 536870912
    %v695 = vshrl.u32 %v694, 30
    %v696 = vshll.u32 %v695, 30
    %v697 = vsub.s32 %v693, %v696
    %vm698 = vcmp.lt.s32.totalorder %v697, 0
    %v699 = vsub.s32 0, %v697
    %v700 = vsel %vm698, %v699, %v697
    %v701 = vclz %v700
    %v702 = vsub.s32 %v701, 2
    %vm703 = vcmp.gt.s32.totalorder 0, %v702
    %v704 = vsel %vm703, 0, %v702
    %v705 = vsub.s32 32, %v704
    %v706 = vshll.u32 %v697, %v704
    %v707 = vshrl.u32 %v689, %v705
    %v708 = vor.u32 %v706, %v707
    %v709 = vsub.s32 4294967266, %v704
    %v710 = vadd.s32 %v709, 127
    %v711 = vshll.u32 %v710, 23
    %v712 = vor.u32 4788187, %v711
    %v713 = vand.u32 2147483647, %v712
    %v715 = vcvt.s32.f32 %v708
    %v716 = vmul.f32 %v715, %v713
    %v717 = vxor.u32 %v716, 2147483648
    %v718 = vsel %vm635, %v717, %v716
    %v719 = vsub.s32 4, %v695
    %v720 = vsel %vm635, %v719, %v695
    %v721 = vsel %vm634, %v323, %v718
    %v722 = vsel %vm634, 0, %v720
    %v723 = vcosq.f32.pop %v721
    %v724 = vsinq.f32.pop %v721
    %vm725 = vweird.f32 %v323
    %v726 = vand.u32 %v722, 3
    %vm727 = vcmp.lt.s32.totalorder %v726, 2
    %vm728 = vcmp.eq.s32.totalorder %v726, 0
    %v729 = vxor.u32 %v724, 2147483648
    %v730 = vsel %vm728, %v723, %v729
    %vm731 = vcmp.eq.s32.totalorder %v726, 2
    %v732 = vxor.u32 %v723, 2147483648
    %v733 = vsel %vm731, %v732, %v724
    %v734 = vsel %vm727, %v730, %v733
    %v735 = vsel %vm725, nan, %v734
    %v736 = vpack.c.bf16 %v426, %v426
    %v737 = vpack.c.bf16 %v529, %v529
    %v738 = vpack.c.bf16 %v632, %v632
    %v739 = vpack.c.bf16 %v735, %v735
    %v741 = vlaneseq
    %v742 = vshrl.u32 %v741, 7
    %v743 = vsub.s32 0, %v742
    %v744 = vrot.slane %v234, %v743
    %v745 = vlaneseq
    %v746 = vshrl.u32 %v745, 7
    %v747 = vsub.s32 1, %v746
    %v748 = vrot.slane %v234, %v747
    %v815 = vunpack.c.l.b16 %v72
    %v816 = vunpack.c.h.b16 %v72
    %v817 = vunpack.c.l.b16 %v73
    %v818 = vunpack.c.h.b16 %v73
    %v819 = vunpack.c.l.b16 %v74
    %v820 = vunpack.c.h.b16 %v74
    %v821 = vunpack.c.l.b16 %v75
    %v822 = vunpack.c.h.b16 %v75
    %v823 = vunpack.c.l.b16 %v76
    %v824 = vunpack.c.h.b16 %v76
    %v825 = vunpack.c.l.b16 %v77
    %v826 = vunpack.c.h.b16 %v77
    %v827 = vunpack.c.l.b16 %v78
    %v828 = vunpack.c.h.b16 %v78
    %v829 = vunpack.c.l.b16 %v79
    %v830 = vunpack.c.h.b16 %v79
    %v831 = vunpack.c.l.b16 %v80
    %v832 = vunpack.c.h.b16 %v80
    %v833 = vunpack.c.l.b16 %v81
    %v834 = vunpack.c.h.b16 %v81
    %v835 = vunpack.c.l.b16 %v82
    %v836 = vunpack.c.h.b16 %v82
    %v837 = vunpack.c.l.b16 %v83
    %v838 = vunpack.c.h.b16 %v83
    %v839 = vunpack.c.l.b16 %v84
    %v840 = vunpack.c.h.b16 %v84
    %v841 = vunpack.c.l.b16 %v85
    %v842 = vunpack.c.h.b16 %v85
    %v843 = vunpack.c.l.b16 %v86
    %v844 = vunpack.c.h.b16 %v86
    %v845 = vunpack.c.l.b16 %v87
    %v846 = vunpack.c.h.b16 %v87
    %v847 = vunpack.c.l.b16 %v88
    %v848 = vunpack.c.h.b16 %v88
    %v849 = vunpack.c.l.b16 %v89
    %v850 = vunpack.c.h.b16 %v89
    %v851 = vunpack.c.l.b16 %v90
    %v852 = vunpack.c.h.b16 %v90
    %v853 = vunpack.c.l.b16 %v91
    %v854 = vunpack.c.h.b16 %v91
    %v855 = vunpack.c.l.b16 %v92
    %v856 = vunpack.c.h.b16 %v92
    %v857 = vunpack.c.l.b16 %v93
    %v858 = vunpack.c.h.b16 %v93
    %v859 = vunpack.c.l.b16 %v94
    %v860 = vunpack.c.h.b16 %v94
    %v861 = vunpack.c.l.b16 %v95
    %v862 = vunpack.c.h.b16 %v95
    %v863 = vunpack.c.l.b16 %v96
    %v864 = vunpack.c.h.b16 %v96
    %v865 = vunpack.c.l.b16 %v97
    %v866 = vunpack.c.h.b16 %v97
    %v867 = vunpack.c.l.b16 %v98
    %v868 = vunpack.c.h.b16 %v98
    %v869 = vunpack.c.l.b16 %v99
    %v870 = vunpack.c.h.b16 %v99
    %v871 = vunpack.c.l.b16 %v100
    %v872 = vunpack.c.h.b16 %v100
    %v873 = vunpack.c.l.b16 %v101
    %v874 = vunpack.c.h.b16 %v101
    %v875 = vunpack.c.l.b16 %v102
    %v876 = vunpack.c.h.b16 %v102
    %v877 = vunpack.c.l.b16 %v103
    %v878 = vunpack.c.h.b16 %v103
    %v879 = vunpack.c.l.b16 %v104
    %v880 = vunpack.c.h.b16 %v104
    %v881 = vunpack.c.l.b16 %v105
    %v882 = vunpack.c.h.b16 %v105
    %v883 = vunpack.c.l.b16 %v106
    %v884 = vunpack.c.h.b16 %v106
    %v885 = vunpack.c.l.b16 %v107
    %v886 = vunpack.c.h.b16 %v107
    %v887 = vunpack.c.l.b16 %v108
    %v888 = vunpack.c.h.b16 %v108
    %v889 = vunpack.c.l.b16 %v109
    %v890 = vunpack.c.h.b16 %v109
    %v891 = vunpack.c.l.b16 %v110
    %v892 = vunpack.c.h.b16 %v110
    %v893 = vunpack.c.l.b16 %v111
    %v894 = vunpack.c.h.b16 %v111
    %v895 = vunpack.c.l.b16 %v112
    %v896 = vunpack.c.h.b16 %v112
    %v897 = vunpack.c.l.b16 %v113
    %v898 = vunpack.c.h.b16 %v113
    %v899 = vunpack.c.l.b16 %v114
    %v900 = vunpack.c.h.b16 %v114
    %v901 = vunpack.c.l.b16 %v115
    %v902 = vunpack.c.h.b16 %v115
    %v903 = vunpack.c.l.b16 %v116
    %v904 = vunpack.c.h.b16 %v116
    %v905 = vunpack.c.l.b16 %v117
    %v906 = vunpack.c.h.b16 %v117
    %v907 = vunpack.c.l.b16 %v118
    %v908 = vunpack.c.h.b16 %v118
    %v909 = vunpack.c.l.b16 %v119
    %v910 = vunpack.c.h.b16 %v119
    %v911 = vunpack.c.l.b16 %v120
    %v912 = vunpack.c.h.b16 %v120
    %v913 = vunpack.c.l.b16 %v121
    %v914 = vunpack.c.h.b16 %v121
    %v915 = vunpack.c.l.b16 %v122
    %v916 = vunpack.c.h.b16 %v122
    %v917 = vunpack.c.l.b16 %v123
    %v918 = vunpack.c.h.b16 %v123
    %v919 = vunpack.c.l.b16 %v124
    %v920 = vunpack.c.h.b16 %v124
    %v921 = vunpack.c.l.b16 %v125
    %v922 = vunpack.c.h.b16 %v125
    %v923 = vunpack.c.l.b16 %v126
    %v924 = vunpack.c.h.b16 %v126
    %v925 = vunpack.c.l.b16 %v127
    %v926 = vunpack.c.h.b16 %v127
    %v927 = vunpack.c.l.b16 %v128
    %v928 = vunpack.c.h.b16 %v128
    %v929 = vunpack.c.l.b16 %v129
    %v930 = vunpack.c.h.b16 %v129
    %v931 = vunpack.c.l.b16 %v130
    %v932 = vunpack.c.h.b16 %v130
    %v933 = vunpack.c.l.b16 %v131
    %v934 = vunpack.c.h.b16 %v131
    %v935 = vunpack.c.l.b16 %v132
    %v936 = vunpack.c.h.b16 %v132
    %v937 = vunpack.c.l.b16 %v133
    %v938 = vunpack.c.h.b16 %v133
    %v939 = vunpack.c.l.b16 %v134
    %v940 = vunpack.c.h.b16 %v134
    %v941 = vunpack.c.l.b16 %v135
    %v942 = vunpack.c.h.b16 %v135
    %v943 = vpack.c.b16 %v817, %v815
    %v944 = vpack.c.b16 %v818, %v816
    %v945 = vpack.c.b16 %v821, %v819
    %v946 = vpack.c.b16 %v822, %v820
    %v947 = vpack.c.b16 %v825, %v823
    %v948 = vpack.c.b16 %v826, %v824
    %v949 = vpack.c.b16 %v829, %v827
    %v950 = vpack.c.b16 %v830, %v828
    %v951 = vpack.c.b16 %v833, %v831
    %v952 = vpack.c.b16 %v834, %v832
    %v953 = vpack.c.b16 %v837, %v835
    %v954 = vpack.c.b16 %v838, %v836
    %v955 = vpack.c.b16 %v841, %v839
    %v956 = vpack.c.b16 %v842, %v840
    %v957 = vpack.c.b16 %v845, %v843
    %v958 = vpack.c.b16 %v846, %v844
    %v959 = vpack.c.b16 %v849, %v847
    %v960 = vpack.c.b16 %v850, %v848
    %v961 = vpack.c.b16 %v853, %v851
    %v962 = vpack.c.b16 %v854, %v852
    %v963 = vpack.c.b16 %v857, %v855
    %v964 = vpack.c.b16 %v858, %v856
    %v965 = vpack.c.b16 %v861, %v859
    %v966 = vpack.c.b16 %v862, %v860
    %v967 = vpack.c.b16 %v865, %v863
    %v968 = vpack.c.b16 %v866, %v864
    %v969 = vpack.c.b16 %v869, %v867
    %v970 = vpack.c.b16 %v870, %v868
    %v971 = vpack.c.b16 %v873, %v871
    %v972 = vpack.c.b16 %v874, %v872
    %v973 = vpack.c.b16 %v877, %v875
    %v974 = vpack.c.b16 %v878, %v876
    %v975 = vpack.c.b16 %v881, %v879
    %v976 = vpack.c.b16 %v882, %v880
    %v977 = vpack.c.b16 %v885, %v883
    %v978 = vpack.c.b16 %v886, %v884
    %v979 = vpack.c.b16 %v889, %v887
    %v980 = vpack.c.b16 %v890, %v888
    %v981 = vpack.c.b16 %v893, %v891
    %v982 = vpack.c.b16 %v894, %v892
    %v983 = vpack.c.b16 %v897, %v895
    %v984 = vpack.c.b16 %v898, %v896
    %v985 = vpack.c.b16 %v901, %v899
    %v986 = vpack.c.b16 %v902, %v900
    %v987 = vpack.c.b16 %v905, %v903
    %v988 = vpack.c.b16 %v906, %v904
    %v989 = vpack.c.b16 %v909, %v907
    %v990 = vpack.c.b16 %v910, %v908
    %v991 = vpack.c.b16 %v913, %v911
    %v992 = vpack.c.b16 %v914, %v912
    %v993 = vpack.c.b16 %v917, %v915
    %v994 = vpack.c.b16 %v918, %v916
    %v995 = vpack.c.b16 %v921, %v919
    %v996 = vpack.c.b16 %v922, %v920
    %v997 = vpack.c.b16 %v925, %v923
    %v998 = vpack.c.b16 %v926, %v924
    %v999 = vpack.c.b16 %v929, %v927
    %v1000 = vpack.c.b16 %v930, %v928
    %v1001 = vpack.c.b16 %v933, %v931
    %v1002 = vpack.c.b16 %v934, %v932
    %v1003 = vpack.c.b16 %v937, %v935
    %v1004 = vpack.c.b16 %v938, %v936
    %v1005 = vpack.c.b16 %v941, %v939
    %v1006 = vpack.c.b16 %v942, %v940
    %1071 = vmatprep.subr.bf16.mxu0 %v944
    %1072 = vmatpush1.bf16.msra.mxu0 %v943
    %1073 = vmatprep.subr.bf16.mxu0 %v946
    %1074 = vmatpush1.bf16.msra.mxu0 %v945
    %1075 = vmatprep.subr.bf16.mxu0 %v948
    %1076 = vmatpush1.bf16.msra.mxu0 %v947
    %1077 = vmatprep.subr.bf16.mxu0 %v950
    %1078 = vmatpush1.bf16.msra.mxu0 %v949
    %1079 = vmatprep.subr.bf16.mxu0 %v952
    %1080 = vmatpush1.bf16.msra.mxu0 %v951
    %1081 = vmatprep.subr.bf16.mxu0 %v954
    %1082 = vmatpush1.bf16.msra.mxu0 %v953
    %1083 = vmatprep.subr.bf16.mxu0 %v956
    %1084 = vmatpush1.bf16.msra.mxu0 %v955
    %1085 = vmatprep.subr.bf16.mxu0 %v958
    %1086 = vmatpush1.bf16.msra.mxu0 %v957
    %1087 = vmatprep.subr.bf16.mxu0 %v960
    %1088 = vmatpush1.bf16.msra.mxu0 %v959
    %1089 = vmatprep.subr.bf16.mxu0 %v962
    %1090 = vmatpush1.bf16.msra.mxu0 %v961
    %1091 = vmatprep.subr.bf16.mxu0 %v964
    %1092 = vmatpush1.bf16.msra.mxu0 %v963
    %1093 = vmatprep.subr.bf16.mxu0 %v966
    %1094 = vmatpush1.bf16.msra.mxu0 %v965
    %1095 = vmatprep.subr.bf16.mxu0 %v968
    %1096 = vmatpush1.bf16.msra.mxu0 %v967
    %1097 = vmatprep.subr.bf16.mxu0 %v970
    %1098 = vmatpush1.bf16.msra.mxu0 %v969
    %1099 = vmatprep.subr.bf16.mxu0 %v972
    %1100 = vmatpush1.bf16.msra.mxu0 %v971
    %1101 = vmatprep.subr.bf16.mxu0 %v974
    %1102 = vmatpush1.bf16.msra.mxu0 %v973
    %1103 = vmatprep.mubr.bf16.mxu0 %v737
    %1104 = vmatmul.mubr.bf16.gmra.mrb[0].mxu0 %v736
    %v1105 = vpop.f32.mrb[0].mxu0
    %v1106 = vadd.f32 %v744, %v1105
    %v1107 = vpop.f32.mrb[0].mxu0
    %v1108 = vadd.f32 %v748, %v1107
    %v1109 = vpop.f32.mrb[0].mxu0
    %v1110 = vpop.f32.mrb[0].mxu0
    %1111 = vdwg.mxu0
    %1112 = vmatprep.subr.bf16.mxu0 %v976
    %1113 = vmatpush1.bf16.msra.mxu0 %v975
    %1114 = vmatprep.subr.bf16.mxu0 %v978
    %1115 = vmatpush1.bf16.msra.mxu0 %v977
    %1116 = vmatprep.subr.bf16.mxu0 %v980
    %1117 = vmatpush1.bf16.msra.mxu0 %v979
    %1118 = vmatprep.subr.bf16.mxu0 %v982
    %1119 = vmatpush1.bf16.msra.mxu0 %v981
    %1120 = vmatprep.subr.bf16.mxu0 %v984
    %1121 = vmatpush1.bf16.msra.mxu0 %v983
    %1122 = vmatprep.subr.bf16.mxu0 %v986
    %1123 = vmatpush1.bf16.msra.mxu0 %v985
    %1124 = vmatprep.subr.bf16.mxu0 %v988
    %1125 = vmatpush1.bf16.msra.mxu0 %v987
    %1126 = vmatprep.subr.bf16.mxu0 %v990
    %1127 = vmatpush1.bf16.msra.mxu0 %v989
    %1128 = vmatprep.subr.bf16.mxu0 %v992
    %1129 = vmatpush1.bf16.msra.mxu0 %v991
    %1130 = vmatprep.subr.bf16.mxu0 %v994
    %1131 = vmatpush1.bf16.msra.mxu0 %v993
    %1132 = vmatprep.subr.bf16.mxu0 %v996
    %1133 = vmatpush1.bf16.msra.mxu0 %v995
    %1134 = vmatprep.subr.bf16.mxu0 %v998
    %1135 = vmatpush1.bf16.msra.mxu0 %v997
    %1136 = vmatprep.subr.bf16.mxu0 %v1000
    %1137 = vmatpush1.bf16.msra.mxu0 %v999
    %1138 = vmatprep.subr.bf16.mxu0 %v1002
    %1139 = vmatpush1.bf16.msra.mxu0 %v1001
    %1140 = vmatprep.subr.bf16.mxu0 %v1004
    %1141 = vmatpush1.bf16.msra.mxu0 %v1003
    %1142 = vmatprep.subr.bf16.mxu0 %v1006
    %1143 = vmatpush1.bf16.msra.mxu0 %v1005
    %1144 = vmatprep.mubr.bf16.mxu0 %v739
    %1145 = vmatmul.mubr.bf16.gmra.mrb[0].mxu0 %v738
    %v1146 = vpop.f32.mrb[0].mxu0
    %v1147 = vadd.f32 %v1106, %v1146
    %v1148 = vpop.f32.mrb[0].mxu0
    %v1149 = vadd.f32 %v1108, %v1148
    %v1150 = vpop.f32.mrb[0].mxu0
    %v1151 = vpop.f32.mrb[0].mxu0
    %1152 = vdwg.mxu0
    %v1153 = vmax.f32 %v1147, 0.0
    %v1154 = vmax.f32 %v1149, 0.0
    %v1155 = vmul.f32 %v318, %v1153
    %v1156 = vmul.f32 %v319, %v1154
    %v1157 = vpack.c.bf16 %v1155, %v1155
    %v1158 = vpack.c.bf16 %v1156, %v1156
    %v1160 = vlaneseq
    %v1161 = vshrl.u32 %v1160, 7
    %v1162 = vsub.s32 0, %v1161
    %v1163 = vrot.slane %v236, %v1162
    %v1164 = vlaneseq
    %v1165 = vshrl.u32 %v1164, 7
    %v1166 = vsub.s32 1, %v1165
    %v1167 = vrot.slane %v236, %v1166
    %v1202 = vunpack.c.l.b16 %v136
    %v1203 = vunpack.c.h.b16 %v136
    %v1204 = vunpack.c.l.b16 %v137
    %v1205 = vunpack.c.h.b16 %v137
    %v1206 = vunpack.c.l.b16 %v138
    %v1207 = vunpack.c.h.b16 %v138
    %v1208 = vunpack.c.l.b16 %v139
    %v1209 = vunpack.c.h.b16 %v139
    %v1210 = vunpack.c.l.b16 %v140
    %v1211 = vunpack.c.h.b16 %v140
    %v1212 = vunpack.c.l.b16 %v141
    %v1213 = vunpack.c.h.b16 %v141
    %v1214 = vunpack.c.l.b16 %v142
    %v1215 = vunpack.c.h.b16 %v142
    %v1216 = vunpack.c.l.b16 %v143
    %v1217 = vunpack.c.h.b16 %v143
    %v1218 = vunpack.c.l.b16 %v144
    %v1219 = vunpack.c.h.b16 %v144
    %v1220 = vunpack.c.l.b16 %v145
    %v1221 = vunpack.c.h.b16 %v145
    %v1222 = vunpack.c.l.b16 %v146
    %v1223 = vunpack.c.h.b16 %v146
    %v1224 = vunpack.c.l.b16 %v147
    %v1225 = vunpack.c.h.b16 %v147
    %v1226 = vunpack.c.l.b16 %v148
    %v1227 = vunpack.c.h.b16 %v148
    %v1228 = vunpack.c.l.b16 %v149
    %v1229 = vunpack.c.h.b16 %v149
    %v1230 = vunpack.c.l.b16 %v150
    %v1231 = vunpack.c.h.b16 %v150
    %v1232 = vunpack.c.l.b16 %v151
    %v1233 = vunpack.c.h.b16 %v151
    %v1234 = vunpack.c.l.b16 %v152
    %v1235 = vunpack.c.h.b16 %v152
    %v1236 = vunpack.c.l.b16 %v153
    %v1237 = vunpack.c.h.b16 %v153
    %v1238 = vunpack.c.l.b16 %v154
    %v1239 = vunpack.c.h.b16 %v154
    %v1240 = vunpack.c.l.b16 %v155
    %v1241 = vunpack.c.h.b16 %v155
    %v1242 = vunpack.c.l.b16 %v156
    %v1243 = vunpack.c.h.b16 %v156
    %v1244 = vunpack.c.l.b16 %v157
    %v1245 = vunpack.c.h.b16 %v157
    %v1246 = vunpack.c.l.b16 %v158
    %v1247 = vunpack.c.h.b16 %v158
    %v1248 = vunpack.c.l.b16 %v159
    %v1249 = vunpack.c.h.b16 %v159
    %v1250 = vunpack.c.l.b16 %v160
    %v1251 = vunpack.c.h.b16 %v160
    %v1252 = vunpack.c.l.b16 %v161
    %v1253 = vunpack.c.h.b16 %v161
    %v1254 = vunpack.c.l.b16 %v162
    %v1255 = vunpack.c.h.b16 %v162
    %v1256 = vunpack.c.l.b16 %v163
    %v1257 = vunpack.c.h.b16 %v163
    %v1258 = vunpack.c.l.b16 %v164
    %v1259 = vunpack.c.h.b16 %v164
    %v1260 = vunpack.c.l.b16 %v165
    %v1261 = vunpack.c.h.b16 %v165
    %v1262 = vunpack.c.l.b16 %v166
    %v1263 = vunpack.c.h.b16 %v166
    %v1264 = vunpack.c.l.b16 %v167
    %v1265 = vunpack.c.h.b16 %v167
    %v1266 = vpack.c.b16 %v1204, %v1202
    %v1267 = vpack.c.b16 %v1205, %v1203
    %v1268 = vpack.c.b16 %v1208, %v1206
    %v1269 = vpack.c.b16 %v1209, %v1207
    %v1270 = vpack.c.b16 %v1212, %v1210
    %v1271 = vpack.c.b16 %v1213, %v1211
    %v1272 = vpack.c.b16 %v1216, %v1214
    %v1273 = vpack.c.b16 %v1217, %v1215
    %v1274 = vpack.c.b16 %v1220, %v1218
    %v1275 = vpack.c.b16 %v1221, %v1219
    %v1276 = vpack.c.b16 %v1224, %v1222
    %v1277 = vpack.c.b16 %v1225, %v1223
    %v1278 = vpack.c.b16 %v1228, %v1226
    %v1279 = vpack.c.b16 %v1229, %v1227
    %v1280 = vpack.c.b16 %v1232, %v1230
    %v1281 = vpack.c.b16 %v1233, %v1231
    %v1282 = vpack.c.b16 %v1236, %v1234
    %v1283 = vpack.c.b16 %v1237, %v1235
    %v1284 = vpack.c.b16 %v1240, %v1238
    %v1285 = vpack.c.b16 %v1241, %v1239
    %v1286 = vpack.c.b16 %v1244, %v1242
    %v1287 = vpack.c.b16 %v1245, %v1243
    %v1288 = vpack.c.b16 %v1248, %v1246
    %v1289 = vpack.c.b16 %v1249, %v1247
    %v1290 = vpack.c.b16 %v1252, %v1250
    %v1291 = vpack.c.b16 %v1253, %v1251
    %v1292 = vpack.c.b16 %v1256, %v1254
    %v1293 = vpack.c.b16 %v1257, %v1255
    %v1294 = vpack.c.b16 %v1260, %v1258
    %v1295 = vpack.c.b16 %v1261, %v1259
    %v1296 = vpack.c.b16 %v1264, %v1262
    %v1297 = vpack.c.b16 %v1265, %v1263
    %1330 = vmatprep.subr.bf16.mxu0 %v1267
    %1331 = vmatpush1.bf16.msra.mxu0 %v1266
    %1332 = vmatprep.subr.bf16.mxu0 %v1269
    %1333 = vmatpush1.bf16.msra.mxu0 %v1268
    %1334 = vmatprep.subr.bf16.mxu0 %v1271
    %1335 = vmatpush1.bf16.msra.mxu0 %v1270
    %1336 = vmatprep.subr.bf16.mxu0 %v1273
    %1337 = vmatpush1.bf16.msra.mxu0 %v1272
    %1338 = vmatprep.subr.bf16.mxu0 %v1275
    %1339 = vmatpush1.bf16.msra.mxu0 %v1274
    %1340 = vmatprep.subr.bf16.mxu0 %v1277
    %1341 = vmatpush1.bf16.msra.mxu0 %v1276
    %1342 = vmatprep.subr.bf16.mxu0 %v1279
    %1343 = vmatpush1.bf16.msra.mxu0 %v1278
    %1344 = vmatprep.subr.bf16.mxu0 %v1281
    %1345 = vmatpush1.bf16.msra.mxu0 %v1280
    %1346 = vmatprep.subr.bf16.mxu0 %v1283
    %1347 = vmatpush1.bf16.msra.mxu0 %v1282
    %1348 = vmatprep.subr.bf16.mxu0 %v1285
    %1349 = vmatpush1.bf16.msra.mxu0 %v1284
    %1350 = vmatprep.subr.bf16.mxu0 %v1287
    %1351 = vmatpush1.bf16.msra.mxu0 %v1286
    %1352 = vmatprep.subr.bf16.mxu0 %v1289
    %1353 = vmatpush1.bf16.msra.mxu0 %v1288
    %1354 = vmatprep.subr.bf16.mxu0 %v1291
    %1355 = vmatpush1.bf16.msra.mxu0 %v1290
    %1356 = vmatprep.subr.bf16.mxu0 %v1293
    %1357 = vmatpush1.bf16.msra.mxu0 %v1292
    %1358 = vmatprep.subr.bf16.mxu0 %v1295
    %1359 = vmatpush1.bf16.msra.mxu0 %v1294
    %1360 = vmatprep.subr.bf16.mxu0 %v1297
    %1361 = vmatpush1.bf16.msra.mxu0 %v1296
    %1362 = vmatprep.mubr.bf16.mxu0 %v1158
    %1363 = vmatmul.mubr.bf16.gmra.mrb[0].mxu0 %v1157
    %v1364 = vpop.f32.mrb[0].mxu0
    %v1365 = vadd.f32 %v1163, %v1364
    %v1366 = vpop.f32.mrb[0].mxu0
    %v1367 = vadd.f32 %v1167, %v1366
    %v1368 = vpop.f32.mrb[0].mxu0
    %v1369 = vpop.f32.mrb[0].mxu0
    %1370 = vdwg.mxu0
    %v1371 = vmax.f32 %v1365, 0.0
    %v1372 = vmax.f32 %v1367, 0.0
    %v1373 = vpack.c.bf16 %v1371, %v1371
    %v1374 = vpack.c.bf16 %v1372, %v1372
    %v1376 = vlaneseq
    %v1377 = vshrl.u32 %v1376, 7
    %v1378 = vsub.s32 0, %v1377
    %v1379 = vrot.slane %v238, %v1378
    %v1380 = vlaneseq
    %v1381 = vshrl.u32 %v1380, 7
    %v1382 = vsub.s32 1, %v1381
    %v1383 = vrot.slane %v238, %v1382
    %v1418 = vunpack.c.l.b16 %v168
    %v1419 = vunpack.c.h.b16 %v168
    %v1420 = vunpack.c.l.b16 %v169
    %v1421 = vunpack.c.h.b16 %v169
    %v1422 = vunpack.c.l.b16 %v170
    %v1423 = vunpack.c.h.b16 %v170
    %v1424 = vunpack.c.l.b16 %v171
    %v1425 = vunpack.c.h.b16 %v171
    %v1426 = vunpack.c.l.b16 %v172
    %v1427 = vunpack.c.h.b16 %v172
    %v1428 = vunpack.c.l.b16 %v173
    %v1429 = vunpack.c.h.b16 %v173
    %v1430 = vunpack.c.l.b16 %v174
    %v1431 = vunpack.c.h.b16 %v174
    %v1432 = vunpack.c.l.b16 %v175
    %v1433 = vunpack.c.h.b16 %v175
    %v1434 = vunpack.c.l.b16 %v176
    %v1435 = vunpack.c.h.b16 %v176
    %v1436 = vunpack.c.l.b16 %v177
    %v1437 = vunpack.c.h.b16 %v177
    %v1438 = vunpack.c.l.b16 %v178
    %v1439 = vunpack.c.h.b16 %v178
    %v1440 = vunpack.c.l.b16 %v179
    %v1441 = vunpack.c.h.b16 %v179
    %v1442 = vunpack.c.l.b16 %v180
    %v1443 = vunpack.c.h.b16 %v180
    %v1444 = vunpack.c.l.b16 %v181
    %v1445 = vunpack.c.h.b16 %v181
    %v1446 = vunpack.c.l.b16 %v182
    %v1447 = vunpack.c.h.b16 %v182
    %v1448 = vunpack.c.l.b16 %v183
    %v1449 = vunpack.c.h.b16 %v183
    %v1450 = vunpack.c.l.b16 %v184
    %v1451 = vunpack.c.h.b16 %v184
    %v1452 = vunpack.c.l.b16 %v185
    %v1453 = vunpack.c.h.b16 %v185
    %v1454 = vunpack.c.l.b16 %v186
    %v1455 = vunpack.c.h.b16 %v186
    %v1456 = vunpack.c.l.b16 %v187
    %v1457 = vunpack.c.h.b16 %v187
    %v1458 = vunpack.c.l.b16 %v188
    %v1459 = vunpack.c.h.b16 %v188
    %v1460 = vunpack.c.l.b16 %v189
    %v1461 = vunpack.c.h.b16 %v189
    %v1462 = vunpack.c.l.b16 %v190
    %v1463 = vunpack.c.h.b16 %v190
    %v1464 = vunpack.c.l.b16 %v191
    %v1465 = vunpack.c.h.b16 %v191
    %v1466 = vunpack.c.l.b16 %v192
    %v1467 = vunpack.c.h.b16 %v192
    %v1468 = vunpack.c.l.b16 %v193
    %v1469 = vunpack.c.h.b16 %v193
    %v1470 = vunpack.c.l.b16 %v194
    %v1471 = vunpack.c.h.b16 %v194
    %v1472 = vunpack.c.l.b16 %v195
    %v1473 = vunpack.c.h.b16 %v195
    %v1474 = vunpack.c.l.b16 %v196
    %v1475 = vunpack.c.h.b16 %v196
    %v1476 = vunpack.c.l.b16 %v197
    %v1477 = vunpack.c.h.b16 %v197
    %v1478 = vunpack.c.l.b16 %v198
    %v1479 = vunpack.c.h.b16 %v198
    %v1480 = vunpack.c.l.b16 %v199
    %v1481 = vunpack.c.h.b16 %v199
    %v1482 = vpack.c.b16 %v1420, %v1418
    %v1483 = vpack.c.b16 %v1421, %v1419
    %v1484 = vpack.c.b16 %v1424, %v1422
    %v1485 = vpack.c.b16 %v1425, %v1423
    %v1486 = vpack.c.b16 %v1428, %v1426
    %v1487 = vpack.c.b16 %v1429, %v1427
    %v1488 = vpack.c.b16 %v1432, %v1430
    %v1489 = vpack.c.b16 %v1433, %v1431
    %v1490 = vpack.c.b16 %v1436, %v1434
    %v1491 = vpack.c.b16 %v1437, %v1435
    %v1492 = vpack.c.b16 %v1440, %v1438
    %v1493 = vpack.c.b16 %v1441, %v1439
    %v1494 = vpack.c.b16 %v1444, %v1442
    %v1495 = vpack.c.b16 %v1445, %v1443
    %v1496 = vpack.c.b16 %v1448, %v1446
    %v1497 = vpack.c.b16 %v1449, %v1447
    %v1498 = vpack.c.b16 %v1452, %v1450
    %v1499 = vpack.c.b16 %v1453, %v1451
    %v1500 = vpack.c.b16 %v1456, %v1454
    %v1501 = vpack.c.b16 %v1457, %v1455
    %v1502 = vpack.c.b16 %v1460, %v1458
    %v1503 = vpack.c.b16 %v1461, %v1459
    %v1504 = vpack.c.b16 %v1464, %v1462
    %v1505 = vpack.c.b16 %v1465, %v1463
    %v1506 = vpack.c.b16 %v1468, %v1466
    %v1507 = vpack.c.b16 %v1469, %v1467
    %v1508 = vpack.c.b16 %v1472, %v1470
    %v1509 = vpack.c.b16 %v1473, %v1471
    %v1510 = vpack.c.b16 %v1476, %v1474
    %v1511 = vpack.c.b16 %v1477, %v1475
    %v1512 = vpack.c.b16 %v1480, %v1478
    %v1513 = vpack.c.b16 %v1481, %v1479
    %1546 = vmatprep.subr.bf16.mxu0 %v1483
    %1547 = vmatpush1.bf16.msra.mxu0 %v1482
    %1548 = vmatprep.subr.bf16.mxu0 %v1485
    %1549 = vmatpush1.bf16.msra.mxu0 %v1484
    %1550 = vmatprep.subr.bf16.mxu0 %v1487
    %1551 = vmatpush1.bf16.msra.mxu0 %v1486
    %1552 = vmatprep.subr.bf16.mxu0 %v1489
    %1553 = vmatpush1.bf16.msra.mxu0 %v1488
    %1554 = vmatprep.subr.bf16.mxu0 %v1491
    %1555 = vmatpush1.bf16.msra.mxu0 %v1490
    %1556 = vmatprep.subr.bf16.mxu0 %v1493
    %1557 = vmatpush1.bf16.msra.mxu0 %v1492
    %1558 = vmatprep.subr.bf16.mxu0 %v1495
    %1559 = vmatpush1.bf16.msra.mxu0 %v1494
    %1560 = vmatprep.subr.bf16.mxu0 %v1497
    %1561 = vmatpush1.bf16.msra.mxu0 %v1496
    %1562 = vmatprep.subr.bf16.mxu0 %v1499
    %1563 = vmatpush1.bf16.msra.mxu0 %v1498
    %1564 = vmatprep.subr.bf16.mxu0 %v1501
    %1565 = vmatpush1.bf16.msra.mxu0 %v1500
    %1566 = vmatprep.subr.bf16.mxu0 %v1503
    %1567 = vmatpush1.bf16.msra.mxu0 %v1502
    %1568 = vmatprep.subr.bf16.mxu0 %v1505
    %1569 = vmatpush1.bf16.msra.mxu0 %v1504
    %1570 = vmatprep.subr.bf16.mxu0 %v1507
    %1571 = vmatpush1.bf16.msra.mxu0 %v1506
    %1572 = vmatprep.subr.bf16.mxu0 %v1509
    %1573 = vmatpush1.bf16.msra.mxu0 %v1508
    %1574 = vmatprep.subr.bf16.mxu0 %v1511
    %1575 = vmatpush1.bf16.msra.mxu0 %v1510
    %1576 = vmatprep.subr.bf16.mxu0 %v1513
    %1577 = vmatpush1.bf16.msra.mxu0 %v1512
    %1578 = vmatprep.mubr.bf16.mxu0 %v1374
    %1579 = vmatmul.mubr.bf16.gmra.mrb[0].mxu0 %v1373
    %v1580 = vpop.f32.mrb[0].mxu0
    %v1581 = vadd.f32 %v1379, %v1580
    %v1582 = vpop.f32.mrb[0].mxu0
    %v1583 = vadd.f32 %v1383, %v1582
    %v1584 = vpop.f32.mrb[0].mxu0
    %v1585 = vpop.f32.mrb[0].mxu0
    %1586 = vdwg.mxu0
    %v1587 = vmax.f32 %v1581, 0.0
    %v1588 = vmax.f32 %v1583, 0.0
    %v1589 = vpack.c.bf16 %v1587, %v1587
    %v1590 = vpack.c.bf16 %v1588, %v1588
    %v1623 = vunpack.c.l.b16 %v200
    %v1624 = vunpack.c.l.b16 %v201
    %v1625 = vunpack.c.l.b16 %v202
    %v1626 = vunpack.c.l.b16 %v203
    %v1627 = vunpack.c.l.b16 %v204
    %v1628 = vunpack.c.l.b16 %v205
    %v1629 = vunpack.c.l.b16 %v206
    %v1630 = vunpack.c.l.b16 %v207
    %v1631 = vunpack.c.l.b16 %v208
    %v1632 = vunpack.c.l.b16 %v209
    %v1633 = vunpack.c.l.b16 %v210
    %v1634 = vunpack.c.l.b16 %v211
    %v1635 = vunpack.c.l.b16 %v212
    %v1636 = vunpack.c.l.b16 %v213
    %v1637 = vunpack.c.l.b16 %v214
    %v1638 = vunpack.c.l.b16 %v215
    %v1639 = vunpack.c.l.b16 %v216
    %v1640 = vunpack.c.l.b16 %v217
    %v1641 = vunpack.c.l.b16 %v218
    %v1642 = vunpack.c.l.b16 %v219
    %v1643 = vunpack.c.l.b16 %v220
    %v1644 = vunpack.c.l.b16 %v221
    %v1645 = vunpack.c.l.b16 %v222
    %v1646 = vunpack.c.l.b16 %v223
    %v1647 = vunpack.c.l.b16 %v224
    %v1648 = vunpack.c.l.b16 %v225
    %v1649 = vunpack.c.l.b16 %v226
    %v1650 = vunpack.c.l.b16 %v227
    %v1651 = vunpack.c.l.b16 %v228
    %v1652 = vunpack.c.l.b16 %v229
    %v1653 = vunpack.c.l.b16 %v230
    %v1654 = vunpack.c.l.b16 %v231
    %v1655 = vpack.c.b16 %v1624, %v1623
    %v1656 = vpack.c.b16 %v1626, %v1625
    %v1657 = vpack.c.b16 %v1628, %v1627
    %v1658 = vpack.c.b16 %v1630, %v1629
    %v1659 = vpack.c.b16 %v1632, %v1631
    %v1660 = vpack.c.b16 %v1634, %v1633
    %v1661 = vpack.c.b16 %v1636, %v1635
    %v1662 = vpack.c.b16 %v1638, %v1637
    %v1663 = vpack.c.b16 %v1640, %v1639
    %v1664 = vpack.c.b16 %v1642, %v1641
    %v1665 = vpack.c.b16 %v1644, %v1643
    %v1666 = vpack.c.b16 %v1646, %v1645
    %v1667 = vpack.c.b16 %v1648, %v1647
    %v1668 = vpack.c.b16 %v1650, %v1649
    %v1669 = vpack.c.b16 %v1652, %v1651
    %v1670 = vpack.c.b16 %v1654, %v1653
    %1687 = vmatprep.subr.bf16.mxu0 0
    %1688 = vmatpush1.bf16.msra.mxu0 %v1655
    %1689 = vmatprep.subr.bf16.mxu0 0
    %1690 = vmatpush1.bf16.msra.mxu0 %v1656
    %1691 = vmatprep.subr.bf16.mxu0 0
    %1692 = vmatpush1.bf16.msra.mxu0 %v1657
    %1693 = vmatprep.subr.bf16.mxu0 0
    %1694 = vmatpush1.bf16.msra.mxu0 %v1658
    %1695 = vmatprep.subr.bf16.mxu0 0
    %1696 = vmatpush1.bf16.msra.mxu0 %v1659
    %1697 = vmatprep.subr.bf16.mxu0 0
    %1698 = vmatpush1.bf16.msra.mxu0 %v1660
    %1699 = vmatprep.subr.bf16.mxu0 0
    %1700 = vmatpush1.bf16.msra.mxu0 %v1661
    %1701 = vmatprep.subr.bf16.mxu0 0
    %1702 = vmatpush1.bf16.msra.mxu0 %v1662
    %1703 = vmatprep.subr.bf16.mxu0 0
    %1704 = vmatpush1.bf16.msra.mxu0 %v1663
    %1705 = vmatprep.subr.bf16.mxu0 0
    %1706 = vmatpush1.bf16.msra.mxu0 %v1664
    %1707 = vmatprep.subr.bf16.mxu0 0
    %1708 = vmatpush1.bf16.msra.mxu0 %v1665
    %1709 = vmatprep.subr.bf16.mxu0 0
    %1710 = vmatpush1.bf16.msra.mxu0 %v1666
    %1711 = vmatprep.subr.bf16.mxu0 0
    %1712 = vmatpush1.bf16.msra.mxu0 %v1667
    %1713 = vmatprep.subr.bf16.mxu0 0
    %1714 = vmatpush1.bf16.msra.mxu0 %v1668
    %1715 = vmatprep.subr.bf16.mxu0 0
    %1716 = vmatpush1.bf16.msra.mxu0 %v1669
    %1717 = vmatprep.subr.bf16.mxu0 0
    %1718 = vmatpush1.bf16.msra.mxu0 %v1670
    %1719 = vmatprep.mubr.bf16.mxu0 %v1590
    %1720 = vmatmul.mubr.bf16.gmra.mrb[0].mxu0 %v1589
    %v1721 = vpop.f32.mrb[0].mxu0
    %v1722 = vadd.f32 %v239, %v1721
    %v1723 = vpop.f32.mrb[0].mxu0
    %v1724 = vpop.f32.mrb[0].mxu0
    %v1725 = vpop.f32.mrb[0].mxu0
    %1726 = vdwg.mxu0
    %1727 = vst [vmem:[#allocation10] sm:$0xff] %v1722
    // Predicated region
    $region34: #{tpu_custom_call.1} parent=1 // pred_check
      _
    $region35: #{tpu_custom_call.1} parent=1 // pred_check_branch
      %1729 = sbr.rel (0) target = $region37
    $region36: #{tpu_custom_call.1} parent=1 // pred_region
      %s1731 = ssub.s32 128, 128
      %1732 = vsyncadd [#allocation4], %s1731
      %s1734 = sshll.u32 [#allocation10], 4
      %s1735 = int_to_ptr.vmem [resolvable:$true] %s1734
      %1737 = dma.vmem_to_hbm [thread:$0]  %s1735, 128, %s4, [#allocation4]
    $region37: #{tpu_custom_call.1} parent=1 // pred_fallthru
      _
    // Predicated region
    $region38: #{tpu_custom_call.1} parent=1 // pred_check
      _
    $region39: #{tpu_custom_call.1} parent=1 // pred_check_branch
      %1739 = sbr.rel (0) target = $region41
    $region40: #{tpu_custom_call.1} parent=1 // pred_region
      %1740 = dma.done [#allocation4], 128
    $region41: #{tpu_custom_call.1} parent=1 // pred_fallthru
      _
    %1741 = vsyncpa [#allocation3], 1
    %1742 = vsyncpa [#allocation6], 1
    %1743 = vsyncpa [#allocation9], 1
    %1744 = vsyncpa [#allocation4], 1

</llo_original>
